<compile_context>
chip_gen: v5e
topology: v5e:2x2
jax: 0.10.0
libtpu: 0.0.40
codegen_flags: <defaults>
</compile_context>

<pallas_src>
import jax
import jax.numpy as jnp
import numpy as np
from jax.experimental import pallas as pl
from jax.experimental.pallas import tpu as pltpu

B = 2           # batch
L = 8           # decoder sequence length
S_ENC = 8       # encoder sequence length
C = 32          # embedding_dim
H = 4           # num_heads
DH = C // H     # head_dim
MLP_RATIO = 4.0
MID = int(C * MLP_RATIO)
SCALE_FACTOR = 2.0
SCALE = (DH * SCALE_FACTOR) ** -0.5
LN_EPS = 1e-5
S_KV = 8        # kv length per batch (== L == S_ENC for both attentions here)

BL = B * L
BS = B * S_ENC

# ----------------------------------------------------------------------------
# Parameter-slab layout (single (160, 384) f32 slab, packed once host-side).
#   rows 0:32,   cols 0:384   : projection weights (columns packed, see WCOL)
#   rows 32:160, cols 0:32    : fc2 weight (MID, C)
#   rows 32:51,  cols 128:256 : bias / LayerNorm vectors (one per row)
#   rows 64:96,  cols 256:288 : block-diagonal head mask M (H*S_KV, C)
# ----------------------------------------------------------------------------
P_ROWS = C + MID          # 160
P_COLS = 8 * C + MID      # 384

WCOL = {                  # column ranges inside rows 0:32
    's_qkv': (0, 3 * C),           # 0:96   (128-aligned start)
    's_out': (3 * C, 4 * C),       # 96:128
    'c_q':   (4 * C, 5 * C),       # 128:160 (128-aligned start)
    'c_kv':  (5 * C, 7 * C),       # 160:224
    'c_out': (7 * C, 8 * C),       # 224:256
    'fc1':   (8 * C, 8 * C + MID), # 256:384 (128-aligned start)
}
FC2_ROW0 = C              # fc2 weight at rows 32:160, cols 0:32
VEC_ROW0 = C              # vector block starts at row 32
VEC_COL0 = 128            # lane-tile aligned
MASK_ROW0 = 64
MASK_COL0 = 256

VEC_NAMES = [
    's_bqkv', 's_bo', 'c_bq', 'c_bkv', 'c_bo', 'fc1_b', 'fc2_b',
    'saln_g', 'saln_b', 'samid_g', 'samid_b',
    'caln_g', 'caln_b', 'camid_g', 'camid_b',
    'ffnln_g', 'ffnln_b', 'ffnmid_g', 'ffnmid_b',
]
VEC_IDX = {n: i for i, n in enumerate(VEC_NAMES)}


# ----------------------------------------------------------------------------
# Kernel
# ----------------------------------------------------------------------------
def ofa_decoder_layer_kernel(act_ref, p_ref, out_ref):
    f32 = jnp.float32

    # Activation slab: x | enc | self-bias | cross-bias stacked along sublanes.
    x   = act_ref[0:BL, :]                      # (16, 32)
    enc = act_ref[BL:BL + BS, :]                # (16, 32)
    sb  = act_ref[BL + BS:2 * BL + BS, :]       # (16, 32) = (B*L, H*L)
    cb  = act_ref[2 * BL + BS:2 * BL + 2 * BS, :]  # (16, 32) = (B*L, H*S_ENC)

    # Constant block-diagonal head mask M[h*S + s, h*DH + d] = 1.
    Mh = p_ref[MASK_ROW0:MASK_ROW0 + H * S_KV, MASK_COL0:MASK_COL0 + C]  # (32, 32)
    fc2_w = p_ref[FC2_ROW0:FC2_ROW0 + MID, 0:C]                          # (128, 32)

    def w(name):
        lo, hi = WCOL[name]
        return p_ref[0:C, lo:hi]

    def vec(name, width):
        r = VEC_ROW0 + VEC_IDX[name]
        return p_ref[r:r + 1, VEC_COL0:VEC_COL0 + width]                 # (1, width)

    def layer_norm(t, gname, bname):
        d = t.shape[-1]
        mu = jnp.mean(t, axis=-1, keepdims=True)
        var = jnp.mean(jnp.square(t - mu), axis=-1, keepdims=True)
        return (t - mu) * jax.lax.rsqrt(var + LN_EPS) * vec(gname, d) + vec(bname, d)

    def attention(q, k, v, bias):
        # q: (B*L, C), k/v: (B*S, C), bias: (B*L, H*S).  The qk scale, the
        # per-head c_attn scale and the additive masks are folded host-side.
        s_kv = k.shape[0] // B
        outs = []
        for b in range(B):                      # B = 2, unrolled; sublane-aligned slices
            qb = q[b * L:(b + 1) * L, :]        # (8, 32)
            kb = k[b * s_kv:(b + 1) * s_kv, :]  # (8, 32)
            vb = v[b * s_kv:(b + 1) * s_kv, :]  # (8, 32)
            bb = bias[b * L:(b + 1) * L, :]     # (8, 32)
            kblk = jnp.concatenate([kb] * H, axis=0) * Mh   # (H*S, C) block-diag
            vblk = jnp.concatenate([vb] * H, axis=0) * Mh   # (H*S, C) block-diag
            s = jax.lax.dot_general(qb, kblk, (((1,), (1,)), ((), ())),
                                    preferred_element_type=f32) + bb     # (L, H*S)
            # No max-subtraction: masked logits are -1e4 (finite) -> exp == 0;
            # unmasked logits are O(1) after the folded qk scale.
            pe = jnp.exp(s)
            num = jnp.dot(pe, vblk, preferred_element_type=f32)          # (L, C)
            den = jnp.dot(pe, Mh, preferred_element_type=f32)            # (L, C)
            outs.append(num / den)              # exact divide (no approx reciprocal)
        return jnp.concatenate(outs, axis=0)    # (B*L, C); sublane-aligned concat

    # ---- self-attention block (pre-norm + normformer mid LN) ----
    residual = x
    h = layer_norm(x, 'saln_g', 'saln_b')
    qkv = jnp.dot(h, w('s_qkv'), preferred_element_type=jnp.float32) + vec('s_bqkv', 3 * C)
    attn = attention(qkv[:, 0:C], qkv[:, C:2 * C], qkv[:, 2 * C:3 * C], sb)
    attn = jnp.dot(attn, w('s_out'), preferred_element_type=jnp.float32) + vec('s_bo', C)
    attn = layer_norm(attn, 'samid_g', 'samid_b')
    x = residual + attn

    # ---- cross-attention block ----
    residual = x
    h = layer_norm(x, 'caln_g', 'caln_b')
    q = jnp.dot(h, w('c_q'), preferred_element_type=jnp.float32) + vec('c_bq', C)
    kv = jnp.dot(enc, w('c_kv'), preferred_element_type=jnp.float32) + vec('c_bkv', 2 * C)
    attn = attention(q, kv[:, 0:C], kv[:, C:2 * C], cb)
    attn = jnp.dot(attn, w('c_out'), preferred_element_type=jnp.float32) + vec('c_bo', C)
    attn = layer_norm(attn, 'camid_g', 'camid_b')
    x = residual + attn

    # ---- FFN block ----
    residual = x
    h = layer_norm(x, 'ffnln_g', 'ffnln_b')
    h = jnp.dot(h, w('fc1'), preferred_element_type=jnp.float32) + vec('fc1_b', MID)
    # TODO(synk): PyTorch nn.GELU defaults to the exact erf GELU; the tanh
    # approximation is used here (erf has no reliable Mosaic lowering).
    h = jax.nn.gelu(h, approximate=True)
    h = layer_norm(h, 'ffnmid_g', 'ffnmid_b')
    h = jnp.dot(h, fc2_w, preferred_element_type=jnp.float32) + vec('fc2_b', C)
    x = residual + h

    out_ref[...] = x.astype(out_ref.dtype)


# ----------------------------------------------------------------------------
# One-time host-side constant folding + packing (hoisted out of the call path).
# ----------------------------------------------------------------------------
def pack_params(p):
    g = lambda k: np.asarray(p[k], np.float32)

    # Fold the qk scale into the q projections.
    s_wq, s_bq = g('s_wq') * SCALE, g('s_bq') * SCALE
    c_wq, c_bq = g('c_wq') * SCALE, g('c_bq') * SCALE

    # Fold the per-head c_attn scale into the rows of the out projections:
    # (attn * ca_expanded) @ wo == attn @ (diag(ca_expanded) @ wo).
    def fold_ca(wo, ca):
        return wo * np.repeat(ca, DH)[:, None]

    s_wo = fold_ca(g('s_wo'), g('s_ca'))
    c_wo = fold_ca(g('c_wo'), g('c_ca'))

    slab = np.zeros((P_ROWS, P_COLS), np.float32)
    proj = np.concatenate(
        [s_wq, g('s_wk'), g('s_wv'), s_wo,
         c_wq, g('c_wk'), g('c_wv'), c_wo, g('fc1_w')], axis=1)
    assert proj.shape == (C, P_COLS)
    slab[0:C, :] = proj
    slab[FC2_ROW0:FC2_ROW0 + MID, 0:C] = g('fc2_w')

    vecs = {
        's_bqkv': np.concatenate([s_bq, g('s_bk'), g('s_bv')], axis=1),
        's_bo': g('s_bo'), 'c_bq': c_bq,
        'c_bkv': np.concatenate([g('c_bk'), g('c_bv')], axis=1),
        'c_bo': g('c_bo'), 'fc1_b': g('fc1_b'), 'fc2_b': g('fc2_b'),
        'saln_g': g('saln_g'), 'saln_b': g('saln_b'),
        'samid_g': g('samid_g'), 'samid_b': g('samid_b'),
        'caln_g': g('caln_g'), 'caln_b': g('caln_b'),
        'camid_g': g('camid_g'), 'camid_b': g('camid_b'),
        'ffnln_g': g('ffnln_g'), 'ffnln_b': g('ffnln_b'),
        'ffnmid_g': g('ffnmid_g'), 'ffnmid_b': g('ffnmid_b'),
    }
    for i, name in enumerate(VEC_NAMES):
        v = vecs[name].reshape(-1)
        slab[VEC_ROW0 + i, VEC_COL0:VEC_COL0 + v.size] = v

    # Block-diagonal head mask M[h*S + s, h*DH + d] = 1.
    m = (np.arange(H * S_KV)[:, None] // S_KV
         == np.arange(C)[None, :] // DH).astype(np.float32)
    slab[MASK_ROW0:MASK_ROW0 + H * S_KV, MASK_COL0:MASK_COL0 + C] = m
    return jnp.asarray(slab)


# ----------------------------------------------------------------------------
# Jitted per-call wrapper (bias folding + slab assembly + pallas_call).
# ----------------------------------------------------------------------------
@jax.jit
def ofa_decoder_layer(x, enc, smask, cmask, sbias, cbias, param_slab):
    b, l, c = x.shape
    s_enc = enc.shape[1]
    nh = sbias.shape[1]
    assert (b, l, c, s_enc, nh) == (B, L, C, S_ENC, H)

    # Fold additive masks into the per-head biases and lay them out lane-dense
    # as (B*L, H*S): row = b*L + l, col = h*S + s.
    sb2 = (sbias + smask).astype(jnp.float32).transpose(0, 2, 1, 3).reshape(b * l, nh * l)
    cb2 = (cbias + cmask).astype(jnp.float32).transpose(0, 2, 1, 3).reshape(b * l, nh * s_enc)
    act = jnp.concatenate(
        [x.reshape(b * l, c).astype(jnp.float32),
         enc.reshape(b * s_enc, c).astype(jnp.float32),
         sb2, cb2], axis=0)                                   # (64, 32)

    out = pl.pallas_call(
        ofa_decoder_layer_kernel,
        out_shape=jax.ShapeDtypeStruct((b * l, c), x.dtype),
        in_specs=[pl.BlockSpec(memory_space=pltpu.MemorySpace.VMEM)] * 2,
        out_specs=pl.BlockSpec(memory_space=pltpu.MemorySpace.VMEM),
        cost_estimate=pl.CostEstimate(flops=750_000,
                                      transcendentals=3_200,
                                      bytes_accessed=256_000),
    )(act, param_slab)
    return out.reshape(b, l, c)


# ----------------------------------------------------------------------------
# Parameter init + pure-JAX reference (original, unfolded weights).
# ----------------------------------------------------------------------------
def init_params(key):
    keys = iter(jax.random.split(key, 32))

    def lin(k, din, dout):
        k1, k2 = jax.random.split(k)
        w = 0.02 * jax.random.normal(k1, (din, dout), jnp.float32)
        bb = 0.02 * jax.random.normal(k2, (1, dout), jnp.float32)
        return w, bb

    p = {}
    for name, kin in [('s', C), ('c', C)]:   # kdim = vdim = C (encoder_embed_dim default)
        p[name + '_wq'], p[name + '_bq'] = lin(next(keys), C, C)
        p[name + '_wk'], p[name + '_bk'] = lin(next(keys), kin, C)
        p[name + '_wv'], p[name + '_bv'] = lin(next(keys), kin, C)
        p[name + '_wo'], p[name + '_bo'] = lin(next(keys), C, C)
        p[name + '_ca'] = (1.0 + 0.1 * jax.random.normal(next(keys), (H,), jnp.float32))
    p['fc1_w'], p['fc1_b'] = lin(next(keys), C, MID)
    p['fc2_w'], p['fc2_b'] = lin(next(keys), MID, C)
    for name, dim in [('saln', C), ('samid', C), ('caln', C), ('camid', C),
                      ('ffnln', C), ('ffnmid', MID)]:
        p[name + '_g'] = (1.0 + 0.05 * jax.random.normal(next(keys), (1, dim))).astype(jnp.float32)
        p[name + '_b'] = 0.05 * jax.random.normal(next(keys), (1, dim), jnp.float32)
    return p


def reference(x, enc, smask, cmask, sbias, cbias, p):
    """Pure-JAX replica of the PyTorch forward (original, unfolded weights)."""
    def ln(v, g, b):
        mu = jnp.mean(v, -1, keepdims=True)
        var = jnp.mean((v - mu) ** 2, -1, keepdims=True)
        return (v - mu) / jnp.sqrt(var + LN_EPS) * g + b

    def mha(q_in, kv_in, pre, mask, bias):
        q = q_in @ p[pre + '_wq'] + p[pre + '_bq']
        k = kv_in @ p[pre + '_wk'] + p[pre + '_bk']
        v = kv_in @ p[pre + '_wv'] + p[pre + '_bv']

        def split(t):
            return t.reshape(t.shape[0], t.shape[1], H, DH).transpose(0, 2, 1, 3)

        qh, kh, vh = split(q), split(k), split(v)
        w = jnp.einsum('bhld,bhsd->bhls', qh, kh) * SCALE
        w = w + bias + mask
        w = jax.nn.softmax(w, -1)
        o = jnp.einsum('bhls,bhsd->bhld', w, vh)
        o = jnp.einsum('bhlc,h->bhlc', o, p[pre + '_ca'])
        o = o.transpose(0, 2, 1, 3).reshape(q_in.shape[0], -1, C)
        return o @ p[pre + '_wo'] + p[pre + '_bo']

    residual = x
    h = ln(x, p['saln_g'], p['saln_b'])
    h = mha(h, h, 's', smask, sbias)
    h = ln(h, p['samid_g'], p['samid_b'])
    x = residual + h

    residual = x
    h = ln(x, p['caln_g'], p['caln_b'])
    h = mha(h, enc, 'c', cmask, cbias)
    h = ln(h, p['camid_g'], p['camid_b'])
    x = residual + h

    residual = x
    h = ln(x, p['ffnln_g'], p['ffnln_b'])
    h = h @ p['fc1_w'] + p['fc1_b']
    h = jax.nn.gelu(h, approximate=True)
    h = ln(h, p['ffnmid_g'], p['ffnmid_b'])
    h = h @ p['fc2_w'] + p['fc2_b']
    return residual + h


if __name__ == "__main__":
    key = jax.random.PRNGKey(0)
    kx, kenc, kb1, kb2, kparam = jax.random.split(key, 5)

    x = jax.random.normal(kx, (B, L, C), jnp.float32)
    enc = jax.random.normal(kenc, (B, S_ENC, C), jnp.float32)

    # causal decoder self-attention mask (B, 1, L, L): 0 allowed, -1e4 masked
    causal = jnp.where(jnp.arange(L)[:, None] >= jnp.arange(L)[None, :],
                       0.0, -1e4).astype(jnp.float32)
    smask = jnp.broadcast_to(causal, (B, 1, L, L))
    cmask = jnp.zeros((B, 1, L, S_ENC), jnp.float32)

    sbias = 0.1 * jax.random.normal(kb1, (B, H, L, L), jnp.float32)
    cbias = 0.1 * jax.random.normal(kb2, (B, H, L, S_ENC), jnp.float32)

    params = init_params(kparam)
    # One-time parameter packing / constant folding (hoisted out of the call path).
    param_slab = pack_params(params)

    out = ofa_decoder_layer(x, enc, smask, cmask, sbias, cbias, param_slab)
    out = jax.block_until_ready(out)

    ref = reference(x, enc, smask, cmask, sbias, cbias, params)
    # Tolerance covers TPU default-precision f32 matmuls (XLA reference vs. the
    # Mosaic in-kernel dots) and host-side constant folding / fused matmuls;
    # the approximate-reciprocal softmax has been replaced with an exact divide.
    np.testing.assert_allclose(np.asarray(out), np.asarray(ref),
                               rtol=5e-3, atol=5e-3)
    print("KERNEL_OK")
</pallas_src>

<mosaic_0001>
module attributes {stable_mosaic.version = 11 : i64} {
  func.func @ofa_decoder_layer_kernel(%arg0: memref<64x32xf32, #tpu.memory_space<vmem>>, %arg1: memref<160x384xf32, #tpu.memory_space<vmem>>, %arg2: memref<16x32xf32, #tpu.memory_space<vmem>>) attributes {dimension_semantics = [], scalar_prefetch = 0 : i64, scratch_operands = 0 : i64, tpu.core_type = #tpu.core_type<tc>} {
    %c0 = arith.constant 0 : index
    %c0_0 = arith.constant 0 : index
    %0 = vector.load %arg0[%c0, %c0_0] : memref<64x32xf32, #tpu.memory_space<vmem>>, vector<16x32xf32>
    %c16 = arith.constant 16 : index
    %c0_1 = arith.constant 0 : index
    %1 = vector.load %arg0[%c16, %c0_1] : memref<64x32xf32, #tpu.memory_space<vmem>>, vector<16x32xf32>
    %c32 = arith.constant 32 : index
    %c0_2 = arith.constant 0 : index
    %2 = vector.load %arg0[%c32, %c0_2] : memref<64x32xf32, #tpu.memory_space<vmem>>, vector<16x32xf32>
    %c48 = arith.constant 48 : index
    %c0_3 = arith.constant 0 : index
    %3 = vector.load %arg0[%c48, %c0_3] : memref<64x32xf32, #tpu.memory_space<vmem>>, vector<16x32xf32>
    %c64 = arith.constant 64 : index
    %c256 = arith.constant 256 : index
    %4 = vector.load %arg1[%c64, %c256] : memref<160x384xf32, #tpu.memory_space<vmem>>, vector<32x32xf32>
    %c32_4 = arith.constant 32 : index
    %c0_5 = arith.constant 0 : index
    %5 = vector.load %arg1[%c32_4, %c0_5] : memref<160x384xf32, #tpu.memory_space<vmem>>, vector<128x32xf32>
    %cst = arith.constant dense<0.000000e+00> : vector<16xf32>
    %6 = vector.multi_reduction <add>, %0, %cst [1] : vector<16x32xf32> to vector<16xf32>
    %7 = vector.shape_cast %6 : vector<16xf32> to vector<16x1xf32>
    %cst_6 = arith.constant 3.200000e+01 : f32
    %8 = vector.broadcast %cst_6 : f32 to vector<16x1xf32>
    %9 = arith.divf %7, %8 : vector<16x1xf32>
    %10 = vector.broadcast %9 : vector<16x1xf32> to vector<16x32xf32>
    %11 = arith.subf %0, %10 : vector<16x32xf32>
    %12 = arith.mulf %11, %11 : vector<16x32xf32>
    %cst_7 = arith.constant dense<0.000000e+00> : vector<16xf32>
    %13 = vector.multi_reduction <add>, %12, %cst_7 [1] : vector<16x32xf32> to vector<16xf32>
    %14 = vector.shape_cast %13 : vector<16xf32> to vector<16x1xf32>
    %cst_8 = arith.constant 3.200000e+01 : f32
    %15 = vector.broadcast %cst_8 : f32 to vector<16x1xf32>
    %16 = arith.divf %14, %15 : vector<16x1xf32>
    %17 = vector.broadcast %9 : vector<16x1xf32> to vector<16x32xf32>
    %18 = arith.subf %0, %17 : vector<16x32xf32>
    %cst_9 = arith.constant 9.99999974E-6 : f32
    %19 = vector.broadcast %cst_9 : f32 to vector<16x1xf32>
    %20 = arith.addf %16, %19 : vector<16x1xf32>
    %21 = math.rsqrt %20 : vector<16x1xf32>
    %22 = vector.broadcast %21 : vector<16x1xf32> to vector<16x32xf32>
    %23 = arith.mulf %18, %22 : vector<16x32xf32>
    %c39 = arith.constant 39 : index
    %c128 = arith.constant 128 : index
    %24 = vector.load %arg1[%c39, %c128] : memref<160x384xf32, #tpu.memory_space<vmem>>, vector<1x32xf32>
    %25 = vector.broadcast %24 : vector<1x32xf32> to vector<16x32xf32>
    %26 = arith.mulf %23, %25 : vector<16x32xf32>
    %c40 = arith.constant 40 : index
    %c128_10 = arith.constant 128 : index
    %27 = vector.load %arg1[%c40, %c128_10] : memref<160x384xf32, #tpu.memory_space<vmem>>, vector<1x32xf32>
    %28 = vector.broadcast %27 : vector<1x32xf32> to vector<16x32xf32>
    %29 = arith.addf %26, %28 : vector<16x32xf32>
    %c0_11 = arith.constant 0 : index
    %c0_12 = arith.constant 0 : index
    %30 = vector.load %arg1[%c0_11, %c0_12] : memref<160x384xf32, #tpu.memory_space<vmem>>, vector<32x96xf32>
    %cst_13 = arith.constant dense<0.000000e+00> : vector<16x96xf32>
    %31 = tpu.matmul %29, %30, %cst_13 {dimension_numbers = #tpu.dot_dimension_numbers<[1], [0], [0], [1], [0, 0, 1, 1], [], []>} : vector<16x32xf32>, vector<32x96xf32>, vector<16x96xf32> -> vector<16x96xf32>
    %c32_14 = arith.constant 32 : index
    %c128_15 = arith.constant 128 : index
    %32 = vector.load %arg1[%c32_14, %c128_15] : memref<160x384xf32, #tpu.memory_space<vmem>>, vector<1x96xf32>
    %33 = vector.broadcast %32 : vector<1x96xf32> to vector<16x96xf32>
    %34 = arith.addf %31, %33 : vector<16x96xf32>
    %35 = vector.extract_strided_slice %34 {offsets = [0, 0], sizes = [16, 32], strides = [1, 1]} : vector<16x96xf32> to vector<16x32xf32>
    %36 = vector.extract_strided_slice %34 {offsets = [0, 32], sizes = [16, 32], strides = [1, 1]} : vector<16x96xf32> to vector<16x32xf32>
    %37 = vector.extract_strided_slice %34 {offsets = [0, 64], sizes = [16, 32], strides = [1, 1]} : vector<16x96xf32> to vector<16x32xf32>
    %38 = vector.extract_strided_slice %35 {offsets = [0, 0], sizes = [8, 32], strides = [1, 1]} : vector<16x32xf32> to vector<8x32xf32>
    %39 = vector.extract_strided_slice %36 {offsets = [0, 0], sizes = [8, 32], strides = [1, 1]} : vector<16x32xf32> to vector<8x32xf32>
    %40 = vector.extract_strided_slice %37 {offsets = [0, 0], sizes = [8, 32], strides = [1, 1]} : vector<16x32xf32> to vector<8x32xf32>
    %41 = vector.extract_strided_slice %2 {offsets = [0, 0], sizes = [8, 32], strides = [1, 1]} : vector<16x32xf32> to vector<8x32xf32>
    %42 = tpu.concatenate %39, %39, %39, %39 in 0 : vector<8x32xf32>, vector<8x32xf32>, vector<8x32xf32>, vector<8x32xf32> -> vector<32x32xf32>
    %43 = arith.mulf %42, %4 : vector<32x32xf32>
    %44 = tpu.concatenate %40, %40, %40, %40 in 0 : vector<8x32xf32>, vector<8x32xf32>, vector<8x32xf32>, vector<8x32xf32> -> vector<32x32xf32>
    %45 = arith.mulf %44, %4 : vector<32x32xf32>
    %cst_16 = arith.constant dense<0.000000e+00> : vector<8x32xf32>
    %46 = tpu.matmul %38, %43, %cst_16 {dimension_numbers = #tpu.dot_dimension_numbers<[1], [1], [0], [0], [0, 0, 1, 0], [], []>} : vector<8x32xf32>, vector<32x32xf32>, vector<8x32xf32> -> vector<8x32xf32>
    %47 = arith.addf %46, %41 : vector<8x32xf32>
    %48 = math.exp %47 : vector<8x32xf32>
    %cst_17 = arith.constant dense<0.000000e+00> : vector<8x32xf32>
    %49 = tpu.matmul %48, %45, %cst_17 {dimension_numbers = #tpu.dot_dimension_numbers<[1], [0], [0], [1], [0, 0, 1, 1], [], []>} : vector<8x32xf32>, vector<32x32xf32>, vector<8x32xf32> -> vector<8x32xf32>
    %cst_18 = arith.constant dense<0.000000e+00> : vector<8x32xf32>
    %50 = tpu.matmul %48, %4, %cst_18 {dimension_numbers = #tpu.dot_dimension_numbers<[1], [0], [0], [1], [0, 0, 1, 1], [], []>} : vector<8x32xf32>, vector<32x32xf32>, vector<8x32xf32> -> vector<8x32xf32>
    %51 = arith.divf %49, %50 : vector<8x32xf32>
    %52 = vector.extract_strided_slice %35 {offsets = [8, 0], sizes = [8, 32], strides = [1, 1]} : vector<16x32xf32> to vector<8x32xf32>
    %53 = vector.extract_strided_slice %36 {offsets = [8, 0], sizes = [8, 32], strides = [1, 1]} : vector<16x32xf32> to vector<8x32xf32>
    %54 = vector.extract_strided_slice %37 {offsets = [8, 0], sizes = [8, 32], strides = [1, 1]} : vector<16x32xf32> to vector<8x32xf32>
    %55 = vector.extract_strided_slice %2 {offsets = [8, 0], sizes = [8, 32], strides = [1, 1]} : vector<16x32xf32> to vector<8x32xf32>
    %56 = tpu.concatenate %53, %53, %53, %53 in 0 : vector<8x32xf32>, vector<8x32xf32>, vector<8x32xf32>, vector<8x32xf32> -> vector<32x32xf32>
    %57 = arith.mulf %56, %4 : vector<32x32xf32>
    %58 = tpu.concatenate %54, %54, %54, %54 in 0 : vector<8x32xf32>, vector<8x32xf32>, vector<8x32xf32>, vector<8x32xf32> -> vector<32x32xf32>
    %59 = arith.mulf %58, %4 : vector<32x32xf32>
    %cst_19 = arith.constant dense<0.000000e+00> : vector<8x32xf32>
    %60 = tpu.matmul %52, %57, %cst_19 {dimension_numbers = #tpu.dot_dimension_numbers<[1], [1], [0], [0], [0, 0, 1, 0], [], []>} : vector<8x32xf32>, vector<32x32xf32>, vector<8x32xf32> -> vector<8x32xf32>
    %61 = arith.addf %60, %55 : vector<8x32xf32>
    %62 = math.exp %61 : vector<8x32xf32>
    %cst_20 = arith.constant dense<0.000000e+00> : vector<8x32xf32>
    %63 = tpu.matmul %62, %59, %cst_20 {dimension_numbers = #tpu.dot_dimension_numbers<[1], [0], [0], [1], [0, 0, 1, 1], [], []>} : vector<8x32xf32>, vector<32x32xf32>, vector<8x32xf32> -> vector<8x32xf32>
    %cst_21 = arith.constant dense<0.000000e+00> : vector<8x32xf32>
    %64 = tpu.matmul %62, %4, %cst_21 {dimension_numbers = #tpu.dot_dimension_numbers<[1], [0], [0], [1], [0, 0, 1, 1], [], []>} : vector<8x32xf32>, vector<32x32xf32>, vector<8x32xf32> -> vector<8x32xf32>
    %65 = arith.divf %63, %64 : vector<8x32xf32>
    %66 = tpu.concatenate %51, %65 in 0 : vector<8x32xf32>, vector<8x32xf32> -> vector<16x32xf32>
    %c0_22 = arith.constant 0 : index
    %c96 = arith.constant 96 : index
    %67 = vector.load %arg1[%c0_22, %c96] : memref<160x384xf32, #tpu.memory_space<vmem>>, vector<32x32xf32>
    %cst_23 = arith.constant dense<0.000000e+00> : vector<16x32xf32>
    %68 = tpu.matmul %66, %67, %cst_23 {dimension_numbers = #tpu.dot_dimension_numbers<[1], [0], [0], [1], [0, 0, 1, 1], [], []>} : vector<16x32xf32>, vector<32x32xf32>, vector<16x32xf32> -> vector<16x32xf32>
    %c33 = arith.constant 33 : index
    %c128_24 = arith.constant 128 : index
    %69 = vector.load %arg1[%c33, %c128_24] : memref<160x384xf32, #tpu.memory_space<vmem>>, vector<1x32xf32>
    %70 = vector.broadcast %69 : vector<1x32xf32> to vector<16x32xf32>
    %71 = arith.addf %68, %70 : vector<16x32xf32>
    %cst_25 = arith.constant dense<0.000000e+00> : vector<16xf32>
    %72 = vector.multi_reduction <add>, %71, %cst_25 [1] : vector<16x32xf32> to vector<16xf32>
    %73 = vector.shape_cast %72 : vector<16xf32> to vector<16x1xf32>
    %cst_26 = arith.constant 3.200000e+01 : f32
    %74 = vector.broadcast %cst_26 : f32 to vector<16x1xf32>
    %75 = arith.divf %73, %74 : vector<16x1xf32>
    %76 = vector.broadcast %75 : vector<16x1xf32> to vector<16x32xf32>
    %77 = arith.subf %71, %76 : vector<16x32xf32>
    %78 = arith.mulf %77, %77 : vector<16x32xf32>
    %cst_27 = arith.constant dense<0.000000e+00> : vector<16xf32>
    %79 = vector.multi_reduction <add>, %78, %cst_27 [1] : vector<16x32xf32> to vector<16xf32>
    %80 = vector.shape_cast %79 : vector<16xf32> to vector<16x1xf32>
    %cst_28 = arith.constant 3.200000e+01 : f32
    %81 = vector.broadcast %cst_28 : f32 to vector<16x1xf32>
    %82 = arith.divf %80, %81 : vector<16x1xf32>
    %83 = vector.broadcast %75 : vector<16x1xf32> to vector<16x32xf32>
    %84 = arith.subf %71, %83 : vector<16x32xf32>
    %cst_29 = arith.constant 9.99999974E-6 : f32
    %85 = vector.broadcast %cst_29 : f32 to vector<16x1xf32>
    %86 = arith.addf %82, %85 : vector<16x1xf32>
    %87 = math.rsqrt %86 : vector<16x1xf32>
    %88 = vector.broadcast %87 : vector<16x1xf32> to vector<16x32xf32>
    %89 = arith.mulf %84, %88 : vector<16x32xf32>
    %c41 = arith.constant 41 : index
    %c128_30 = arith.constant 128 : index
    %90 = vector.load %arg1[%c41, %c128_30] : memref<160x384xf32, #tpu.memory_space<vmem>>, vector<1x32xf32>
    %91 = vector.broadcast %90 : vector<1x32xf32> to vector<16x32xf32>
    %92 = arith.mulf %89, %91 : vector<16x32xf32>
    %c42 = arith.constant 42 : index
    %c128_31 = arith.constant 128 : index
    %93 = vector.load %arg1[%c42, %c128_31] : memref<160x384xf32, #tpu.memory_space<vmem>>, vector<1x32xf32>
    %94 = vector.broadcast %93 : vector<1x32xf32> to vector<16x32xf32>
    %95 = arith.addf %92, %94 : vector<16x32xf32>
    %96 = arith.addf %0, %95 : vector<16x32xf32>
    %cst_32 = arith.constant dense<0.000000e+00> : vector<16xf32>
    %97 = vector.multi_reduction <add>, %96, %cst_32 [1] : vector<16x32xf32> to vector<16xf32>
    %98 = vector.shape_cast %97 : vector<16xf32> to vector<16x1xf32>
    %cst_33 = arith.constant 3.200000e+01 : f32
    %99 = vector.broadcast %cst_33 : f32 to vector<16x1xf32>
    %100 = arith.divf %98, %99 : vector<16x1xf32>
    %101 = vector.broadcast %100 : vector<16x1xf32> to vector<16x32xf32>
    %102 = arith.subf %96, %101 : vector<16x32xf32>
    %103 = arith.mulf %102, %102 : vector<16x32xf32>
    %cst_34 = arith.constant dense<0.000000e+00> : vector<16xf32>
    %104 = vector.multi_reduction <add>, %103, %cst_34 [1] : vector<16x32xf32> to vector<16xf32>
    %105 = vector.shape_cast %104 : vector<16xf32> to vector<16x1xf32>
    %cst_35 = arith.constant 3.200000e+01 : f32
    %106 = vector.broadcast %cst_35 : f32 to vector<16x1xf32>
    %107 = arith.divf %105, %106 : vector<16x1xf32>
    %108 = vector.broadcast %100 : vector<16x1xf32> to vector<16x32xf32>
    %109 = arith.subf %96, %108 : vector<16x32xf32>
    %cst_36 = arith.constant 9.99999974E-6 : f32
    %110 = vector.broadcast %cst_36 : f32 to vector<16x1xf32>
    %111 = arith.addf %107, %110 : vector<16x1xf32>
    %112 = math.rsqrt %111 : vector<16x1xf32>
    %113 = vector.broadcast %112 : vector<16x1xf32> to vector<16x32xf32>
    %114 = arith.mulf %109, %113 : vector<16x32xf32>
    %c43 = arith.constant 43 : index
    %c128_37 = arith.constant 128 : index
    %115 = vector.load %arg1[%c43, %c128_37] : memref<160x384xf32, #tpu.memory_space<vmem>>, vector<1x32xf32>
    %116 = vector.broadcast %115 : vector<1x32xf32> to vector<16x32xf32>
    %117 = arith.mulf %114, %116 : vector<16x32xf32>
    %c44 = arith.constant 44 : index
    %c128_38 = arith.constant 128 : index
    %118 = vector.load %arg1[%c44, %c128_38] : memref<160x384xf32, #tpu.memory_space<vmem>>, vector<1x32xf32>
    %119 = vector.broadcast %118 : vector<1x32xf32> to vector<16x32xf32>
    %120 = arith.addf %117, %119 : vector<16x32xf32>
    %c0_39 = arith.constant 0 : index
    %c128_40 = arith.constant 128 : index
    %121 = vector.load %arg1[%c0_39, %c128_40] : memref<160x384xf32, #tpu.memory_space<vmem>>, vector<32x32xf32>
    %cst_41 = arith.constant dense<0.000000e+00> : vector<16x32xf32>
    %122 = tpu.matmul %120, %121, %cst_41 {dimension_numbers = #tpu.dot_dimension_numbers<[1], [0], [0], [1], [0, 0, 1, 1], [], []>} : vector<16x32xf32>, vector<32x32xf32>, vector<16x32xf32> -> vector<16x32xf32>
    %c34 = arith.constant 34 : index
    %c128_42 = arith.constant 128 : index
    %123 = vector.load %arg1[%c34, %c128_42] : memref<160x384xf32, #tpu.memory_space<vmem>>, vector<1x32xf32>
    %124 = vector.broadcast %123 : vector<1x32xf32> to vector<16x32xf32>
    %125 = arith.addf %122, %124 : vector<16x32xf32>
    %c0_43 = arith.constant 0 : index
    %c160 = arith.constant 160 : index
    %126 = vector.load %arg1[%c0_43, %c160] : memref<160x384xf32, #tpu.memory_space<vmem>>, vector<32x64xf32>
    %cst_44 = arith.constant dense<0.000000e+00> : vector<16x64xf32>
    %127 = tpu.matmul %1, %126, %cst_44 {dimension_numbers = #tpu.dot_dimension_numbers<[1], [0], [0], [1], [0, 0, 1, 1], [], []>} : vector<16x32xf32>, vector<32x64xf32>, vector<16x64xf32> -> vector<16x64xf32>
    %c35 = arith.constant 35 : index
    %c128_45 = arith.constant 128 : index
    %128 = vector.load %arg1[%c35, %c128_45] : memref<160x384xf32, #tpu.memory_space<vmem>>, vector<1x64xf32>
    %129 = vector.broadcast %128 : vector<1x64xf32> to vector<16x64xf32>
    %130 = arith.addf %127, %129 : vector<16x64xf32>
    %131 = vector.extract_strided_slice %130 {offsets = [0, 0], sizes = [16, 32], strides = [1, 1]} : vector<16x64xf32> to vector<16x32xf32>
    %132 = vector.extract_strided_slice %130 {offsets = [0, 32], sizes = [16, 32], strides = [1, 1]} : vector<16x64xf32> to vector<16x32xf32>
    %133 = vector.extract_strided_slice %125 {offsets = [0, 0], sizes = [8, 32], strides = [1, 1]} : vector<16x32xf32> to vector<8x32xf32>
    %134 = vector.extract_strided_slice %131 {offsets = [0, 0], sizes = [8, 32], strides = [1, 1]} : vector<16x32xf32> to vector<8x32xf32>
    %135 = vector.extract_strided_slice %132 {offsets = [0, 0], sizes = [8, 32], strides = [1, 1]} : vector<16x32xf32> to vector<8x32xf32>
    %136 = vector.extract_strided_slice %3 {offsets = [0, 0], sizes = [8, 32], strides = [1, 1]} : vector<16x32xf32> to vector<8x32xf32>
    %137 = tpu.concatenate %134, %134, %134, %134 in 0 : vector<8x32xf32>, vector<8x32xf32>, vector<8x32xf32>, vector<8x32xf32> -> vector<32x32xf32>
    %138 = arith.mulf %137, %4 : vector<32x32xf32>
    %139 = tpu.concatenate %135, %135, %135, %135 in 0 : vector<8x32xf32>, vector<8x32xf32>, vector<8x32xf32>, vector<8x32xf32> -> vector<32x32xf32>
    %140 = arith.mulf %139, %4 : vector<32x32xf32>
    %cst_46 = arith.constant dense<0.000000e+00> : vector<8x32xf32>
    %141 = tpu.matmul %133, %138, %cst_46 {dimension_numbers = #tpu.dot_dimension_numbers<[1], [1], [0], [0], [0, 0, 1, 0], [], []>} : vector<8x32xf32>, vector<32x32xf32>, vector<8x32xf32> -> vector<8x32xf32>
    %142 = arith.addf %141, %136 : vector<8x32xf32>
    %143 = math.exp %142 : vector<8x32xf32>
    %cst_47 = arith.constant dense<0.000000e+00> : vector<8x32xf32>
    %144 = tpu.matmul %143, %140, %cst_47 {dimension_numbers = #tpu.dot_dimension_numbers<[1], [0], [0], [1], [0, 0, 1, 1], [], []>} : vector<8x32xf32>, vector<32x32xf32>, vector<8x32xf32> -> vector<8x32xf32>
    %cst_48 = arith.constant dense<0.000000e+00> : vector<8x32xf32>
    %145 = tpu.matmul %143, %4, %cst_48 {dimension_numbers = #tpu.dot_dimension_numbers<[1], [0], [0], [1], [0, 0, 1, 1], [], []>} : vector<8x32xf32>, vector<32x32xf32>, vector<8x32xf32> -> vector<8x32xf32>
    %146 = arith.divf %144, %145 : vector<8x32xf32>
    %147 = vector.extract_strided_slice %125 {offsets = [8, 0], sizes = [8, 32], strides = [1, 1]} : vector<16x32xf32> to vector<8x32xf32>
    %148 = vector.extract_strided_slice %131 {offsets = [8, 0], sizes = [8, 32], strides = [1, 1]} : vector<16x32xf32> to vector<8x32xf32>
    %149 = vector.extract_strided_slice %132 {offsets = [8, 0], sizes = [8, 32], strides = [1, 1]} : vector<16x32xf32> to vector<8x32xf32>
    %150 = vector.extract_strided_slice %3 {offsets = [8, 0], sizes = [8, 32], strides = [1, 1]} : vector<16x32xf32> to vector<8x32xf32>
    %151 = tpu.concatenate %148, %148, %148, %148 in 0 : vector<8x32xf32>, vector<8x32xf32>, vector<8x32xf32>, vector<8x32xf32> -> vector<32x32xf32>
    %152 = arith.mulf %151, %4 : vector<32x32xf32>
    %153 = tpu.concatenate %149, %149, %149, %149 in 0 : vector<8x32xf32>, vector<8x32xf32>, vector<8x32xf32>, vector<8x32xf32> -> vector<32x32xf32>
    %154 = arith.mulf %153, %4 : vector<32x32xf32>
    %cst_49 = arith.constant dense<0.000000e+00> : vector<8x32xf32>
    %155 = tpu.matmul %147, %152, %cst_49 {dimension_numbers = #tpu.dot_dimension_numbers<[1], [1], [0], [0], [0, 0, 1, 0], [], []>} : vector<8x32xf32>, vector<32x32xf32>, vector<8x32xf32> -> vector<8x32xf32>
    %156 = arith.addf %155, %150 : vector<8x32xf32>
    %157 = math.exp %156 : vector<8x32xf32>
    %cst_50 = arith.constant dense<0.000000e+00> : vector<8x32xf32>
    %158 = tpu.matmul %157, %154, %cst_50 {dimension_numbers = #tpu.dot_dimension_numbers<[1], [0], [0], [1], [0, 0, 1, 1], [], []>} : vector<8x32xf32>, vector<32x32xf32>, vector<8x32xf32> -> vector<8x32xf32>
    %cst_51 = arith.constant dense<0.000000e+00> : vector<8x32xf32>
    %159 = tpu.matmul %157, %4, %cst_51 {dimension_numbers = #tpu.dot_dimension_numbers<[1], [0], [0], [1], [0, 0, 1, 1], [], []>} : vector<8x32xf32>, vector<32x32xf32>, vector<8x32xf32> -> vector<8x32xf32>
    %160 = arith.divf %158, %159 : vector<8x32xf32>
    %161 = tpu.concatenate %146, %160 in 0 : vector<8x32xf32>, vector<8x32xf32> -> vector<16x32xf32>
    %c0_52 = arith.constant 0 : index
    %c224 = arith.constant 224 : index
    %162 = vector.load %arg1[%c0_52, %c224] : memref<160x384xf32, #tpu.memory_space<vmem>>, vector<32x32xf32>
    %cst_53 = arith.constant dense<0.000000e+00> : vector<16x32xf32>
    %163 = tpu.matmul %161, %162, %cst_53 {dimension_numbers = #tpu.dot_dimension_numbers<[1], [0], [0], [1], [0, 0, 1, 1], [], []>} : vector<16x32xf32>, vector<32x32xf32>, vector<16x32xf32> -> vector<16x32xf32>
    %c36 = arith.constant 36 : index
    %c128_54 = arith.constant 128 : index
    %164 = vector.load %arg1[%c36, %c128_54] : memref<160x384xf32, #tpu.memory_space<vmem>>, vector<1x32xf32>
    %165 = vector.broadcast %164 : vector<1x32xf32> to vector<16x32xf32>
    %166 = arith.addf %163, %165 : vector<16x32xf32>
    %cst_55 = arith.constant dense<0.000000e+00> : vector<16xf32>
    %167 = vector.multi_reduction <add>, %166, %cst_55 [1] : vector<16x32xf32> to vector<16xf32>
    %168 = vector.shape_cast %167 : vector<16xf32> to vector<16x1xf32>
    %cst_56 = arith.constant 3.200000e+01 : f32
    %169 = vector.broadcast %cst_56 : f32 to vector<16x1xf32>
    %170 = arith.divf %168, %169 : vector<16x1xf32>
    %171 = vector.broadcast %170 : vector<16x1xf32> to vector<16x32xf32>
    %172 = arith.subf %166, %171 : vector<16x32xf32>
    %173 = arith.mulf %172, %172 : vector<16x32xf32>
    %cst_57 = arith.constant dense<0.000000e+00> : vector<16xf32>
    %174 = vector.multi_reduction <add>, %173, %cst_57 [1] : vector<16x32xf32> to vector<16xf32>
    %175 = vector.shape_cast %174 : vector<16xf32> to vector<16x1xf32>
    %cst_58 = arith.constant 3.200000e+01 : f32
    %176 = vector.broadcast %cst_58 : f32 to vector<16x1xf32>
    %177 = arith.divf %175, %176 : vector<16x1xf32>
    %178 = vector.broadcast %170 : vector<16x1xf32> to vector<16x32xf32>
    %179 = arith.subf %166, %178 : vector<16x32xf32>
    %cst_59 = arith.constant 9.99999974E-6 : f32
    %180 = vector.broadcast %cst_59 : f32 to vector<16x1xf32>
    %181 = arith.addf %177, %180 : vector<16x1xf32>
    %182 = math.rsqrt %181 : vector<16x1xf32>
    %183 = vector.broadcast %182 : vector<16x1xf32> to vector<16x32xf32>
    %184 = arith.mulf %179, %183 : vector<16x32xf32>
    %c45 = arith.constant 45 : index
    %c128_60 = arith.constant 128 : index
    %185 = vector.load %arg1[%c45, %c128_60] : memref<160x384xf32, #tpu.memory_space<vmem>>, vector<1x32xf32>
    %186 = vector.broadcast %185 : vector<1x32xf32> to vector<16x32xf32>
    %187 = arith.mulf %184, %186 : vector<16x32xf32>
    %c46 = arith.constant 46 : index
    %c128_61 = arith.constant 128 : index
    %188 = vector.load %arg1[%c46, %c128_61] : memref<160x384xf32, #tpu.memory_space<vmem>>, vector<1x32xf32>
    %189 = vector.broadcast %188 : vector<1x32xf32> to vector<16x32xf32>
    %190 = arith.addf %187, %189 : vector<16x32xf32>
    %191 = arith.addf %96, %190 : vector<16x32xf32>
    %cst_62 = arith.constant dense<0.000000e+00> : vector<16xf32>
    %192 = vector.multi_reduction <add>, %191, %cst_62 [1] : vector<16x32xf32> to vector<16xf32>
    %193 = vector.shape_cast %192 : vector<16xf32> to vector<16x1xf32>
    %cst_63 = arith.constant 3.200000e+01 : f32
    %194 = vector.broadcast %cst_63 : f32 to vector<16x1xf32>
    %195 = arith.divf %193, %194 : vector<16x1xf32>
    %196 = vector.broadcast %195 : vector<16x1xf32> to vector<16x32xf32>
    %197 = arith.subf %191, %196 : vector<16x32xf32>
    %198 = arith.mulf %197, %197 : vector<16x32xf32>
    %cst_64 = arith.constant dense<0.000000e+00> : vector<16xf32>
    %199 = vector.multi_reduction <add>, %198, %cst_64 [1] : vector<16x32xf32> to vector<16xf32>
    %200 = vector.shape_cast %199 : vector<16xf32> to vector<16x1xf32>
    %cst_65 = arith.constant 3.200000e+01 : f32
    %201 = vector.broadcast %cst_65 : f32 to vector<16x1xf32>
    %202 = arith.divf %200, %201 : vector<16x1xf32>
    %203 = vector.broadcast %195 : vector<16x1xf32> to vector<16x32xf32>
    %204 = arith.subf %191, %203 : vector<16x32xf32>
    %cst_66 = arith.constant 9.99999974E-6 : f32
    %205 = vector.broadcast %cst_66 : f32 to vector<16x1xf32>
    %206 = arith.addf %202, %205 : vector<16x1xf32>
    %207 = math.rsqrt %206 : vector<16x1xf32>
    %208 = vector.broadcast %207 : vector<16x1xf32> to vector<16x32xf32>
    %209 = arith.mulf %204, %208 : vector<16x32xf32>
    %c47 = arith.constant 47 : index
    %c128_67 = arith.constant 128 : index
    %210 = vector.load %arg1[%c47, %c128_67] : memref<160x384xf32, #tpu.memory_space<vmem>>, vector<1x32xf32>
    %211 = vector.broadcast %210 : vector<1x32xf32> to vector<16x32xf32>
    %212 = arith.mulf %209, %211 : vector<16x32xf32>
    %c48_68 = arith.constant 48 : index
    %c128_69 = arith.constant 128 : index
    %213 = vector.load %arg1[%c48_68, %c128_69] : memref<160x384xf32, #tpu.memory_space<vmem>>, vector<1x32xf32>
    %214 = vector.broadcast %213 : vector<1x32xf32> to vector<16x32xf32>
    %215 = arith.addf %212, %214 : vector<16x32xf32>
    %c0_70 = arith.constant 0 : index
    %c256_71 = arith.constant 256 : index
    %216 = vector.load %arg1[%c0_70, %c256_71] : memref<160x384xf32, #tpu.memory_space<vmem>>, vector<32x128xf32>
    %cst_72 = arith.constant dense<0.000000e+00> : vector<16x128xf32>
    %217 = tpu.matmul %215, %216, %cst_72 {dimension_numbers = #tpu.dot_dimension_numbers<[1], [0], [0], [1], [0, 0, 1, 1], [], []>} : vector<16x32xf32>, vector<32x128xf32>, vector<16x128xf32> -> vector<16x128xf32>
    %c37 = arith.constant 37 : index
    %c128_73 = arith.constant 128 : index
    %218 = vector.load %arg1[%c37, %c128_73] : memref<160x384xf32, #tpu.memory_space<vmem>>, vector<1x128xf32>
    %219 = vector.broadcast %218 : vector<1x128xf32> to vector<16x128xf32>
    %220 = arith.addf %217, %219 : vector<16x128xf32>
    %221 = arith.mulf %220, %220 : vector<16x128xf32>
    %222 = arith.mulf %220, %221 : vector<16x128xf32>
    %cst_74 = arith.constant 4.471500e-02 : f32
    %223 = vector.broadcast %cst_74 : f32 to vector<16x128xf32>
    %224 = arith.mulf %223, %222 : vector<16x128xf32>
    %225 = arith.addf %220, %224 : vector<16x128xf32>
    %cst_75 = arith.constant 0.797884583 : f32
    %226 = vector.broadcast %cst_75 : f32 to vector<16x128xf32>
    %227 = arith.mulf %226, %225 : vector<16x128xf32>
    %228 = math.tanh %227 : vector<16x128xf32>
    %cst_76 = arith.constant 1.000000e+00 : f32
    %229 = vector.broadcast %cst_76 : f32 to vector<16x128xf32>
    %230 = arith.addf %229, %228 : vector<16x128xf32>
    %cst_77 = arith.constant 5.000000e-01 : f32
    %231 = vector.broadcast %cst_77 : f32 to vector<16x128xf32>
    %232 = arith.mulf %231, %230 : vector<16x128xf32>
    %233 = arith.mulf %220, %232 : vector<16x128xf32>
    %cst_78 = arith.constant dense<0.000000e+00> : vector<16xf32>
    %234 = vector.multi_reduction <add>, %233, %cst_78 [1] : vector<16x128xf32> to vector<16xf32>
    %235 = vector.shape_cast %234 : vector<16xf32> to vector<16x1xf32>
    %cst_79 = arith.constant 1.280000e+02 : f32
    %236 = vector.broadcast %cst_79 : f32 to vector<16x1xf32>
    %237 = arith.divf %235, %236 : vector<16x1xf32>
    %238 = vector.broadcast %237 : vector<16x1xf32> to vector<16x128xf32>
    %239 = arith.subf %233, %238 : vector<16x128xf32>
    %240 = arith.mulf %239, %239 : vector<16x128xf32>
    %cst_80 = arith.constant dense<0.000000e+00> : vector<16xf32>
    %241 = vector.multi_reduction <add>, %240, %cst_80 [1] : vector<16x128xf32> to vector<16xf32>
    %242 = vector.shape_cast %241 : vector<16xf32> to vector<16x1xf32>
    %cst_81 = arith.constant 1.280000e+02 : f32
    %243 = vector.broadcast %cst_81 : f32 to vector<16x1xf32>
    %244 = arith.divf %242, %243 : vector<16x1xf32>
    %245 = vector.broadcast %237 : vector<16x1xf32> to vector<16x128xf32>
    %246 = arith.subf %233, %245 : vector<16x128xf32>
    %cst_82 = arith.constant 9.99999974E-6 : f32
    %247 = vector.broadcast %cst_82 : f32 to vector<16x1xf32>
    %248 = arith.addf %244, %247 : vector<16x1xf32>
    %249 = math.rsqrt %248 : vector<16x1xf32>
    %250 = vector.broadcast %249 : vector<16x1xf32> to vector<16x128xf32>
    %251 = arith.mulf %246, %250 : vector<16x128xf32>
    %c49 = arith.constant 49 : index
    %c128_83 = arith.constant 128 : index
    %252 = vector.load %arg1[%c49, %c128_83] : memref<160x384xf32, #tpu.memory_space<vmem>>, vector<1x128xf32>
    %253 = vector.broadcast %252 : vector<1x128xf32> to vector<16x128xf32>
    %254 = arith.mulf %251, %253 : vector<16x128xf32>
    %c50 = arith.constant 50 : index
    %c128_84 = arith.constant 128 : index
    %255 = vector.load %arg1[%c50, %c128_84] : memref<160x384xf32, #tpu.memory_space<vmem>>, vector<1x128xf32>
    %256 = vector.broadcast %255 : vector<1x128xf32> to vector<16x128xf32>
    %257 = arith.addf %254, %256 : vector<16x128xf32>
    %cst_85 = arith.constant dense<0.000000e+00> : vector<16x32xf32>
    %258 = tpu.matmul %257, %5, %cst_85 {dimension_numbers = #tpu.dot_dimension_numbers<[1], [0], [0], [1], [0, 0, 1, 1], [], []>} : vector<16x128xf32>, vector<128x32xf32>, vector<16x32xf32> -> vector<16x32xf32>
    %c38 = arith.constant 38 : index
    %c128_86 = arith.constant 128 : index
    %259 = vector.load %arg1[%c38, %c128_86] : memref<160x384xf32, #tpu.memory_space<vmem>>, vector<1x32xf32>
    %260 = vector.broadcast %259 : vector<1x32xf32> to vector<16x32xf32>
    %261 = arith.addf %258, %260 : vector<16x32xf32>
    %262 = arith.addf %191, %261 : vector<16x32xf32>
    %c0_87 = arith.constant 0 : index
    %c0_88 = arith.constant 0 : index
    %263 = vector.load %arg2[%c0_87, %c0_88] : memref<16x32xf32, #tpu.memory_space<vmem>>, vector<16x32xf32>
    tpu.vector_store %arg2[%c0_87, %c0_88], %262 {strides = array<i32>} : memref<16x32xf32, #tpu.memory_space<vmem>>, vector<16x32xf32>,
    return
  }
}

</mosaic_0001>

<llo_original>
// kernel: ofa_decoder_layer.1
$region0: #{ofa_decoder_layer.1}
  #allocation0 [shape = 'u32[]', space=smem, size = 0x4, offset = 0x4, fixed_abs, tag = 'smem constant byte address 0x4 - core index']
  #allocation1 [shape = 'u32[72,128]{1,0:T(1,128)}', space=vmem, size = 0x9000, scoped, tag = 'internal scratch']
  %s0 = inlined_call_operand.vmem [shape: f32[64,32], index: 0, kind: input, shape index: {}]
  %s1 = inlined_call_operand.vmem [shape: f32[160,384], index: 1, kind: input, shape index: {}]
  %s2 = inlined_call_operand.hbm [shape: f32[16,32], index: 2, kind: output, shape index: {}]
  %s3 = sld [smem:[#allocation0]]
  $region18: #{ofa_decoder_layer.1} parent=0
    _
  %s5 = ssub.s32 1, %s3
  %s6 = scalar_select 0, %s5, %s3
  $region1: #{ofa_decoder_layer.1} parent=0
    #allocation2 [shape = 'u8[8192]{0}', space=vmem, size = 0x2000, scoped, tag = 'output window, operand 0, single buffered']
    #allocation3 [shape = 's32[1]{0}', space=sflag, size = 0x4, scoped, tag = 'scoped memory for ofa_decoder_layer.1']
    %7 = vsyncpa [#allocation3], 0
    // Predicated region
    $region2: #{ofa_decoder_layer.1} parent=1 // pred_check
      _
    $region3: #{ofa_decoder_layer.1} parent=1 // pred_check_branch
      %9 = sbr.rel (0) target = $region5
    $region4: #{ofa_decoder_layer.1} parent=1 // pred_region
      _
    $region5: #{ofa_decoder_layer.1} parent=1 // pred_fallthru
      _
    // Predicated region
    $region6: #{ofa_decoder_layer.1} parent=1 // pred_check
      _
    $region7: #{ofa_decoder_layer.1} parent=1 // pred_check_branch
      %11 = sbr.rel (0) target = $region9
    $region8: #{ofa_decoder_layer.1} parent=1 // pred_region
      _
    $region9: #{ofa_decoder_layer.1} parent=1 // pred_fallthru
      _
    %v12 = vld [vmem:[%s0] sm:$0xff]
    %v13 = vld [vmem:[%s0 + $0x8] sm:$0xff]
    %v14 = vld [vmem:[%s0 + $0x10] sm:$0xff]
    %v15 = vld [vmem:[%s0 + $0x18] sm:$0xff]
    %v16 = vld [vmem:[%s0 + $0x20] sm:$0xff]
    %v17 = vld [vmem:[%s0 + $0x28] sm:$0xff]
    %v18 = vld [vmem:[%s0 + $0x30] sm:$0xff]
    %v19 = vld [vmem:[%s0 + $0x38] sm:$0xff]
    %v20 = vld [vmem:[%s1 + $0xd0] sm:$0xff]
    %v21 = vld [vmem:[%s1 + $0xe8] sm:$0xff]
    %v22 = vld [vmem:[%s1 + $0x100] sm:$0xff]
    %v23 = vld [vmem:[%s1 + $0x118] sm:$0xff]
    %v24 = vld [vmem:[%s1 + $0x60] sm:$0xff]
    %v25 = vld [vmem:[%s1 + $0x78] sm:$0xff]
    %v26 = vld [vmem:[%s1 + $0x90] sm:$0xff]
    %v27 = vld [vmem:[%s1 + $0xa8] sm:$0xff]
    %v28 = vld [vmem:[%s1 + $0xc0] sm:$0xff]
    %v29 = vld [vmem:[%s1 + $0xd8] sm:$0xff]
    %v30 = vld [vmem:[%s1 + $0xf0] sm:$0xff]
    %v31 = vld [vmem:[%s1 + $0x108] sm:$0xff]
    %v32 = vld [vmem:[%s1 + $0x120] sm:$0xff]
    %v33 = vld [vmem:[%s1 + $0x138] sm:$0xff]
    %v34 = vld [vmem:[%s1 + $0x150] sm:$0xff]
    %v35 = vld [vmem:[%s1 + $0x168] sm:$0xff]
    %v36 = vld [vmem:[%s1 + $0x180] sm:$0xff]
    %v37 = vld [vmem:[%s1 + $0x198] sm:$0xff]
    %v38 = vld [vmem:[%s1 + $0x1b0] sm:$0xff]
    %v39 = vld [vmem:[%s1 + $0x1c8] sm:$0xff]
    %vm40 = vcmask 261120
    %v41 = vsel %vm40, %v12, 0.0
    %42 = vadd.xlane.f32.xlu0 %v41
    %v43 = vpop.xlane.xlu0 %42
    %v44 = vsel %vm40, %v13, 0.0
    %45 = vadd.xlane.f32.xlu0 %v44
    %v46 = vpop.xlane.xlu0 %45
    %v47 = vrcp.pop 32.0
    %v48 = vmul.f32 32.0, %v47
    %v49 = vsub.f32 1.0, %v48
    %v50 = vmul.f32 %v47, %v49
    %v51 = vadd.f32 %v47, %v50
    %vm52 = vweird.f32 %v47
    %v53 = vsel %vm52, %v47, %v51
    %v54 = vmul.f32 %v43, %v53
    %v55 = vmul.f32 %v46, %v53
    %v56 = vsub.f32 %v12, %v54
    %v57 = vsub.f32 %v13, %v55
    %v58 = vmul.f32 %v56, %v56
    %v59 = vmul.f32 %v57, %v57
    %v60 = vsel %vm40, %v58, 0.0
    %61 = vadd.xlane.f32.xlu0 %v60
    %v62 = vpop.xlane.xlu0 %61
    %v63 = vsel %vm40, %v59, 0.0
    %64 = vadd.xlane.f32.xlu0 %v63
    %v65 = vpop.xlane.xlu0 %64
    %v66 = vmul.f32 %v62, %v53
    %v67 = vmul.f32 %v65, %v53
    %v68 = vadd.f32 %v66, 1e-05
    %v69 = vadd.f32 %v67, 1e-05
    %v70 = vrsqrt.pop %v68
    %v71 = vmul.f32 %v70, %v68
    %v72 = vmul.f32 %v71, %v70
    %v73 = vmul.f32 0.5, %v72
    %v74 = vsub.f32 1.5, %v73
    %v75 = vmul.f32 %v70, %v74
    %vm76 = vweird.f32 %v68
    %vm77 = vweird.f32 %v70
    %vm78 = vmor %vm76, %vm77
    %v79 = vsel %vm78, %v70, %v75
    %v80 = vrsqrt.pop %v69
    %v81 = vmul.f32 %v80, %v69
    %v82 = vmul.f32 %v81, %v80
    %v83 = vmul.f32 0.5, %v82
    %v84 = vsub.f32 1.5, %v83
    %v85 = vmul.f32 %v80, %v84
    %vm86 = vweird.f32 %v69
    %vm87 = vweird.f32 %v80
    %vm88 = vmor %vm86, %vm87
    %v89 = vsel %vm88, %v80, %v85
    %v90 = vmul.f32 %v56, %v79
    %v91 = vmul.f32 %v57, %v89
    %v92 = vld [vmem:[%s1 + $0x6f] ss:$0 sm:$0xff]
    %v93 = vmul.f32 %v90, %v92
    %v94 = vmul.f32 %v91, %v92
    %v95 = vld [vmem:[%s1 + $0x80] ss:$0 sm:$0xff]
    %v96 = vadd.f32 %v93, %v95
    %v97 = vadd.f32 %v94, %v95
    %v98 = vld [vmem:[%s1] sm:$0xff]
    %v99 = vld [vmem:[%s1 + $0x18] sm:$0xff]
    %v100 = vld [vmem:[%s1 + $0x30] sm:$0xff]
    %v101 = vld [vmem:[%s1 + $0x48] sm:$0xff]
    %v102 = vld [vmem:[%s1 + $0x68] ss:$0 sm:$0xff]
    %v104 = vsel %vm40, %v96, 0
    %v107 = vsel %vm40, %v97, 0
    %109 = vmatpush.msra.mxu0 0.0
    %110 = vmatpush.msra.mxu0 0.0
    %111 = vmatpush.msra.mxu0 0.0
    %112 = vmatpush.msra.mxu0 0.0
    %113 = vmatpush.msra.mxu0 0.0
    %114 = vmatpush.msra.mxu0 0.0
    %115 = vmatpush.msra.mxu0 0.0
    %116 = vmatpush.msra.mxu0 0.0
    %117 = vmatpush.msra.mxu0 0.0
    %118 = vmatpush.msra.mxu0 0.0
    %119 = vmatpush.msra.mxu0 0.0
    %120 = vmatpush.msra.mxu0 0.0
    %121 = vmatpush.msra.mxu0 %v101
    %122 = vmatpush.msra.mxu0 %v100
    %123 = vmatpush.msra.mxu0 %v99
    %124 = vmatpush.msra.mxu0 %v98
    %125 = vmatmul.f32.gmra.mxu0 %v104
    %v126 = vpop.f32.mrf.mxu0
    %v127 = vadd.f32 %v102, %v126
    %128 = vmatmul.f32.gmra.mxu0 %v107
    %v129 = vpop.f32.mrf.mxu0
    %v130 = vadd.f32 %v102, %v129
    %131 = vdwg.mxu0
    %136 = vrot.lane.b32.xlu0 %v20, 32
    %v137 = vpop.permute.xlu0 %136
    %138 = vrot.lane.b32.xlu0 %v21, 32
    %v139 = vpop.permute.xlu0 %138
    %140 = vrot.lane.b32.xlu0 %v22, 32
    %v141 = vpop.permute.xlu0 %140
    %142 = vrot.lane.b32.xlu0 %v23, 32
    %v143 = vpop.permute.xlu0 %142
    %v148 = vmul.f32 %v127, %v137
    %v149 = vmul.f32 %v127, %v139
    %v150 = vmul.f32 %v127, %v141
    %v151 = vmul.f32 %v127, %v143
    %152 = vrot.lane.b32.xlu0 %v20, 64
    %v153 = vpop.permute.xlu0 %152
    %154 = vrot.lane.b32.xlu0 %v21, 64
    %v155 = vpop.permute.xlu0 %154
    %156 = vrot.lane.b32.xlu0 %v22, 64
    %v157 = vpop.permute.xlu0 %156
    %158 = vrot.lane.b32.xlu0 %v23, 64
    %v159 = vpop.permute.xlu0 %158
    %v164 = vmul.f32 %v127, %v153
    %v165 = vmul.f32 %v127, %v155
    %v166 = vmul.f32 %v127, %v157
    %v167 = vmul.f32 %v127, %v159
    %172 = vrot.lane.b32.xlu0 %v148, 96
    %v173 = vpop.permute.xlu0 %172
    %174 = vrot.lane.b32.xlu0 %v149, 96
    %v175 = vpop.permute.xlu0 %174
    %176 = vrot.lane.b32.xlu0 %v150, 96
    %v177 = vpop.permute.xlu0 %176
    %178 = vrot.lane.b32.xlu0 %v151, 96
    %v179 = vpop.permute.xlu0 %178
    %v181 = vsel %vm40, %v127, 0
    %v183 = vsel %vm40, %v173, 0
    %v185 = vsel %vm40, %v175, 0
    %v187 = vsel %vm40, %v177, 0
    %v189 = vsel %vm40, %v179, 0
    %191 = vmatpush.xpose.msra.mxu0 0.0
    %192 = vmatpush.xpose.msra.mxu0 0.0
    %193 = vmatpush.xpose.msra.mxu0 0.0
    %194 = vmatpush.xpose.msra.mxu0 0.0
    %195 = vmatpush.xpose.msra.mxu0 0.0
    %196 = vmatpush.xpose.msra.mxu0 0.0
    %197 = vmatpush.xpose.msra.mxu0 0.0
    %198 = vmatpush.xpose.msra.mxu0 0.0
    %199 = vmatpush.xpose.msra.mxu0 0.0
    %200 = vmatpush.xpose.msra.mxu0 0.0
    %201 = vmatpush.xpose.msra.mxu0 0.0
    %202 = vmatpush.xpose.msra.mxu0 0.0
    %203 = vmatpush.xpose.msra.mxu0 %v189
    %204 = vmatpush.xpose.msra.mxu0 %v187
    %205 = vmatpush.xpose.msra.mxu0 %v185
    %206 = vmatpush.xpose.msra.mxu0 %v183
    %207 = vmatmul.f32.gmra.mxu0 %v181
    %v208 = vpop.f32.mrf.mxu0
    %v209 = vadd.f32 %v16, %v208
    %210 = vdwg.mxu0
    %v211 = vmul.f32 %v209, 1.442695
    %v212 = vpow.pop %v211
    %217 = vrot.lane.b32.xlu0 %v164, 64
    %v218 = vpop.permute.xlu0 %217
    %219 = vrot.lane.b32.xlu0 %v165, 64
    %v220 = vpop.permute.xlu0 %219
    %221 = vrot.lane.b32.xlu0 %v166, 64
    %v222 = vpop.permute.xlu0 %221
    %223 = vrot.lane.b32.xlu0 %v167, 64
    %v224 = vpop.permute.xlu0 %223
    %v230 = vsel %vm40, %v212, 0
    %232 = vmatpush.msra.mxu0 0.0
    %233 = vmatpush.msra.mxu0 0.0
    %234 = vmatpush.msra.mxu0 0.0
    %235 = vmatpush.msra.mxu0 0.0
    %236 = vmatpush.msra.mxu0 0.0
    %237 = vmatpush.msra.mxu0 0.0
    %238 = vmatpush.msra.mxu0 0.0
    %239 = vmatpush.msra.mxu0 0.0
    %240 = vmatpush.msra.mxu0 0.0
    %241 = vmatpush.msra.mxu0 0.0
    %242 = vmatpush.msra.mxu0 0.0
    %243 = vmatpush.msra.mxu0 0.0
    %244 = vmatpush.msra.mxu0 %v224
    %245 = vmatpush.msra.mxu0 %v222
    %246 = vmatpush.msra.mxu0 %v220
    %247 = vmatpush.msra.mxu0 %v218
    %248 = vmatmul.f32.gmra.mxu0 %v230
    %v249 = vpop.f32.mrf.mxu0
    %v250 = vadd.f32 0.0, %v249
    %251 = vdwg.mxu0
    %252 = vmatpush.msra.mxu0 0.0
    %253 = vmatpush.msra.mxu0 0.0
    %254 = vmatpush.msra.mxu0 0.0
    %255 = vmatpush.msra.mxu0 0.0
    %256 = vmatpush.msra.mxu0 0.0
    %257 = vmatpush.msra.mxu0 0.0
    %258 = vmatpush.msra.mxu0 0.0
    %259 = vmatpush.msra.mxu0 0.0
    %260 = vmatpush.msra.mxu0 0.0
    %261 = vmatpush.msra.mxu0 0.0
    %262 = vmatpush.msra.mxu0 0.0
    %263 = vmatpush.msra.mxu0 0.0
    %264 = vmatpush.msra.mxu0 %v23
    %265 = vmatpush.msra.mxu0 %v22
    %266 = vmatpush.msra.mxu0 %v21
    %267 = vmatpush.msra.mxu0 %v20
    %268 = vmatmul.f32.gmra.mxu0 %v230
    %v269 = vpop.f32.mrf.mxu0
    %v270 = vadd.f32 0.0, %v269
    %271 = vdwg.mxu0
    %v272 = vrcp.pop %v270
    %v273 = vmul.f32 %v270, %v272
    %v274 = vsub.f32 1.0, %v273
    %v275 = vmul.f32 %v272, %v274
    %v276 = vadd.f32 %v272, %v275
    %vm277 = vweird.f32 %v270
    %vm278 = vweird.f32 %v272
    %vm279 = vmor %vm277, %vm278
    %v280 = vsel %vm279, %v272, %v276
    %v281 = vand.u32 2147483647, %v270
    %vm282 = vcmp.eq.f32.partialorder %v281, 8.507059e+37
    %v283 = vand.u32 %v270, 2147483648
    %v284 = vor.u32 1.1754944e-38, %v283
    %v285 = vsel %vm282, %v284, %v280
    %v286 = vmul.f32 %v250, %v285
    %v287 = vmul.f32 %v130, %v137
    %v288 = vmul.f32 %v130, %v139
    %v289 = vmul.f32 %v130, %v141
    %v290 = vmul.f32 %v130, %v143
    %v291 = vmul.f32 %v130, %v153
    %v292 = vmul.f32 %v130, %v155
    %v293 = vmul.f32 %v130, %v157
    %v294 = vmul.f32 %v130, %v159
    %299 = vrot.lane.b32.xlu0 %v287, 96
    %v300 = vpop.permute.xlu0 %299
    %301 = vrot.lane.b32.xlu0 %v288, 96
    %v302 = vpop.permute.xlu0 %301
    %303 = vrot.lane.b32.xlu0 %v289, 96
    %v304 = vpop.permute.xlu0 %303
    %305 = vrot.lane.b32.xlu0 %v290, 96
    %v306 = vpop.permute.xlu0 %305
    %v308 = vsel %vm40, %v130, 0
    %v310 = vsel %vm40, %v300, 0
    %v312 = vsel %vm40, %v302, 0
    %v314 = vsel %vm40, %v304, 0
    %v316 = vsel %vm40, %v306, 0
    %318 = vmatpush.xpose.msra.mxu0 0.0
    %319 = vmatpush.xpose.msra.mxu0 0.0
    %320 = vmatpush.xpose.msra.mxu0 0.0
    %321 = vmatpush.xpose.msra.mxu0 0.0
    %322 = vmatpush.xpose.msra.mxu0 0.0
    %323 = vmatpush.xpose.msra.mxu0 0.0
    %324 = vmatpush.xpose.msra.mxu0 0.0
    %325 = vmatpush.xpose.msra.mxu0 0.0
    %326 = vmatpush.xpose.msra.mxu0 0.0
    %327 = vmatpush.xpose.msra.mxu0 0.0
    %328 = vmatpush.xpose.msra.mxu0 0.0
    %329 = vmatpush.xpose.msra.mxu0 0.0
    %330 = vmatpush.xpose.msra.mxu0 %v316
    %331 = vmatpush.xpose.msra.mxu0 %v314
    %332 = vmatpush.xpose.msra.mxu0 %v312
    %333 = vmatpush.xpose.msra.mxu0 %v310
    %334 = vmatmul.f32.gmra.mxu0 %v308
    %v335 = vpop.f32.mrf.mxu0
    %v336 = vadd.f32 %v17, %v335
    %337 = vdwg.mxu0
    %v338 = vmul.f32 %v336, 1.442695
    %v339 = vpow.pop %v338
    %344 = vrot.lane.b32.xlu0 %v291, 64
    %v345 = vpop.permute.xlu0 %344
    %346 = vrot.lane.b32.xlu0 %v292, 64
    %v347 = vpop.permute.xlu0 %346
    %348 = vrot.lane.b32.xlu0 %v293, 64
    %v349 = vpop.permute.xlu0 %348
    %350 = vrot.lane.b32.xlu0 %v294, 64
    %v351 = vpop.permute.xlu0 %350
    %v357 = vsel %vm40, %v339, 0
    %359 = vmatpush.msra.mxu0 0.0
    %360 = vmatpush.msra.mxu0 0.0
    %361 = vmatpush.msra.mxu0 0.0
    %362 = vmatpush.msra.mxu0 0.0
    %363 = vmatpush.msra.mxu0 0.0
    %364 = vmatpush.msra.mxu0 0.0
    %365 = vmatpush.msra.mxu0 0.0
    %366 = vmatpush.msra.mxu0 0.0
    %367 = vmatpush.msra.mxu0 0.0
    %368 = vmatpush.msra.mxu0 0.0
    %369 = vmatpush.msra.mxu0 0.0
    %370 = vmatpush.msra.mxu0 0.0
    %371 = vmatpush.msra.mxu0 %v351
    %372 = vmatpush.msra.mxu0 %v349
    %373 = vmatpush.msra.mxu0 %v347
    %374 = vmatpush.msra.mxu0 %v345
    %375 = vmatmul.f32.gmra.mxu0 %v357
    %v376 = vpop.f32.mrf.mxu0
    %v377 = vadd.f32 0.0, %v376
    %378 = vdwg.mxu0
    %379 = vmatpush.msra.mxu0 0.0
    %380 = vmatpush.msra.mxu0 0.0
    %381 = vmatpush.msra.mxu0 0.0
    %382 = vmatpush.msra.mxu0 0.0
    %383 = vmatpush.msra.mxu0 0.0
    %384 = vmatpush.msra.mxu0 0.0
    %385 = vmatpush.msra.mxu0 0.0
    %386 = vmatpush.msra.mxu0 0.0
    %387 = vmatpush.msra.mxu0 0.0
    %388 = vmatpush.msra.mxu0 0.0
    %389 = vmatpush.msra.mxu0 0.0
    %390 = vmatpush.msra.mxu0 0.0
    %391 = vmatpush.msra.mxu0 %v23
    %392 = vmatpush.msra.mxu0 %v22
    %393 = vmatpush.msra.mxu0 %v21
    %394 = vmatpush.msra.mxu0 %v20
    %395 = vmatmul.f32.gmra.mxu0 %v357
    %v396 = vpop.f32.mrf.mxu0
    %v397 = vadd.f32 0.0, %v396
    %398 = vdwg.mxu0
    %v399 = vrcp.pop %v397
    %v400 = vmul.f32 %v397, %v399
    %v401 = vsub.f32 1.0, %v400
    %v402 = vmul.f32 %v399, %v401
    %v403 = vadd.f32 %v399, %v402
    %vm404 = vweird.f32 %v397
    %vm405 = vweird.f32 %v399
    %vm406 = vmor %vm404, %vm405
    %v407 = vsel %vm406, %v399, %v403
    %v408 = vand.u32 2147483647, %v397
    %vm409 = vcmp.eq.f32.partialorder %v408, 8.507059e+37
    %v410 = vand.u32 %v397, 2147483648
    %v411 = vor.u32 1.1754944e-38, %v410
    %v412 = vsel %vm409, %v411, %v407
    %v413 = vmul.f32 %v377, %v412
    %v414 = vld [vmem:[%s1 + $0x69] ss:$0 sm:$0xff]
    %419 = vrot.lane.b32.xlu0 %v98, 32
    %v420 = vpop.permute.xlu0 %419
    %421 = vrot.lane.b32.xlu0 %v99, 32
    %v422 = vpop.permute.xlu0 %421
    %423 = vrot.lane.b32.xlu0 %v100, 32
    %v424 = vpop.permute.xlu0 %423
    %425 = vrot.lane.b32.xlu0 %v101, 32
    %v426 = vpop.permute.xlu0 %425
    %v432 = vsel %vm40, %v286, 0
    %v435 = vsel %vm40, %v413, 0
    %437 = vmatpush.msra.mxu0 0.0
    %438 = vmatpush.msra.mxu0 0.0
    %439 = vmatpush.msra.mxu0 0.0
    %440 = vmatpush.msra.mxu0 0.0
    %441 = vmatpush.msra.mxu0 0.0
    %442 = vmatpush.msra.mxu0 0.0
    %443 = vmatpush.msra.mxu0 0.0
    %444 = vmatpush.msra.mxu0 0.0
    %445 = vmatpush.msra.mxu0 0.0
    %446 = vmatpush.msra.mxu0 0.0
    %447 = vmatpush.msra.mxu0 0.0
    %448 = vmatpush.msra.mxu0 0.0
    %449 = vmatpush.msra.mxu0 %v426
    %450 = vmatpush.msra.mxu0 %v424
    %451 = vmatpush.msra.mxu0 %v422
    %452 = vmatpush.msra.mxu0 %v420
    %453 = vmatmul.f32.gmra.mxu0 %v432
    %v454 = vpop.f32.mrf.mxu0
    %v455 = vadd.f32 %v414, %v454
    %456 = vmatmul.f32.gmra.mxu0 %v435
    %v457 = vpop.f32.mrf.mxu0
    %v458 = vadd.f32 %v414, %v457
    %459 = vdwg.mxu0
    %v460 = vsel %vm40, %v455, 0.0
    %461 = vadd.xlane.f32.xlu0 %v460
    %v462 = vpop.xlane.xlu0 %461
    %v463 = vsel %vm40, %v458, 0.0
    %464 = vadd.xlane.f32.xlu0 %v463
    %v465 = vpop.xlane.xlu0 %464
    %v466 = vmul.f32 %v462, %v53
    %v467 = vmul.f32 %v465, %v53
    %v468 = vsub.f32 %v455, %v466
    %v469 = vsub.f32 %v458, %v467
    %v470 = vmul.f32 %v468, %v468
    %v471 = vmul.f32 %v469, %v469
    %v472 = vsel %vm40, %v470, 0.0
    %473 = vadd.xlane.f32.xlu0 %v472
    %v474 = vpop.xlane.xlu0 %473
    %v475 = vsel %vm40, %v471, 0.0
    %476 = vadd.xlane.f32.xlu0 %v475
    %v477 = vpop.xlane.xlu0 %476
    %v478 = vmul.f32 %v474, %v53
    %v479 = vmul.f32 %v477, %v53
    %v480 = vadd.f32 %v478, 1e-05
    %v481 = vadd.f32 %v479, 1e-05
    %v482 = vrsqrt.pop %v480
    %v483 = vmul.f32 %v482, %v480
    %v484 = vmul.f32 %v483, %v482
    %v485 = vmul.f32 0.5, %v484
    %v486 = vsub.f32 1.5, %v485
    %v487 = vmul.f32 %v482, %v486
    %vm488 = vweird.f32 %v480
    %vm489 = vweird.f32 %v482
    %vm490 = vmor %vm488, %vm489
    %v491 = vsel %vm490, %v482, %v487
    %v492 = vrsqrt.pop %v481
    %v493 = vmul.f32 %v492, %v481
    %v494 = vmul.f32 %v493, %v492
    %v495 = vmul.f32 0.5, %v494
    %v496 = vsub.f32 1.5, %v495
    %v497 = vmul.f32 %v492, %v496
    %vm498 = vweird.f32 %v481
    %vm499 = vweird.f32 %v492
    %vm500 = vmor %vm498, %vm499
    %v501 = vsel %vm500, %v492, %v497
    %v502 = vmul.f32 %v468, %v491
    %v503 = vmul.f32 %v469, %v501
    %v504 = vld [vmem:[%s1 + $0x81] ss:$0 sm:$0xff]
    %v505 = vmul.f32 %v502, %v504
    %v506 = vmul.f32 %v503, %v504
    %v507 = vld [vmem:[%s1 + $0x82] ss:$0 sm:$0xff]
    %v508 = vadd.f32 %v505, %v507
    %v509 = vadd.f32 %v506, %v507
    %v510 = vadd.f32 %v12, %v508
    %v511 = vadd.f32 %v13, %v509
    %v512 = vsel %vm40, %v510, 0.0
    %513 = vadd.xlane.f32.xlu0 %v512
    %v514 = vpop.xlane.xlu0 %513
    %v515 = vsel %vm40, %v511, 0.0
    %516 = vadd.xlane.f32.xlu0 %v515
    %v517 = vpop.xlane.xlu0 %516
    %v518 = vmul.f32 %v514, %v53
    %v519 = vmul.f32 %v517, %v53
    %v520 = vsub.f32 %v510, %v518
    %v521 = vsub.f32 %v511, %v519
    %v522 = vmul.f32 %v520, %v520
    %v523 = vmul.f32 %v521, %v521
    %v524 = vsel %vm40, %v522, 0.0
    %525 = vadd.xlane.f32.xlu0 %v524
    %v526 = vpop.xlane.xlu0 %525
    %v527 = vsel %vm40, %v523, 0.0
    %528 = vadd.xlane.f32.xlu0 %v527
    %v529 = vpop.xlane.xlu0 %528
    %v530 = vmul.f32 %v526, %v53
    %v531 = vmul.f32 %v529, %v53
    %v532 = vadd.f32 %v530, 1e-05
    %v533 = vadd.f32 %v531, 1e-05
    %v534 = vrsqrt.pop %v532
    %v535 = vmul.f32 %v534, %v532
    %v536 = vmul.f32 %v535, %v534
    %v537 = vmul.f32 0.5, %v536
    %v538 = vsub.f32 1.5, %v537
    %v539 = vmul.f32 %v534, %v538
    %vm540 = vweird.f32 %v532
    %vm541 = vweird.f32 %v534
    %vm542 = vmor %vm540, %vm541
    %v543 = vsel %vm542, %v534, %v539
    %v544 = vrsqrt.pop %v533
    %v545 = vmul.f32 %v544, %v533
    %v546 = vmul.f32 %v545, %v544
    %v547 = vmul.f32 0.5, %v546
    %v548 = vsub.f32 1.5, %v547
    %v549 = vmul.f32 %v544, %v548
    %vm550 = vweird.f32 %v533
    %vm551 = vweird.f32 %v544
    %vm552 = vmor %vm550, %vm551
    %v553 = vsel %vm552, %v544, %v549
    %v554 = vmul.f32 %v520, %v543
    %v555 = vmul.f32 %v521, %v553
    %v556 = vld [vmem:[%s1 + $0x83] ss:$0 sm:$0xff]
    %v557 = vmul.f32 %v554, %v556
    %v558 = vmul.f32 %v555, %v556
    %v559 = vld [vmem:[%s1 + $0x84] ss:$0 sm:$0xff]
    %v560 = vadd.f32 %v557, %v559
    %v561 = vadd.f32 %v558, %v559
    %v562 = vld [vmem:[%s1 + $0x8] sm:$0xff]
    %v563 = vld [vmem:[%s1 + $0x20] sm:$0xff]
    %v564 = vld [vmem:[%s1 + $0x38] sm:$0xff]
    %v565 = vld [vmem:[%s1 + $0x50] sm:$0xff]
    %v566 = vld [vmem:[%s1 + $0x6a] ss:$0 sm:$0xff]
    %v568 = vsel %vm40, %v560, 0
    %v571 = vsel %vm40, %v561, 0
    %573 = vmatpush.msra.mxu0 0.0
    %574 = vmatpush.msra.mxu0 0.0
    %575 = vmatpush.msra.mxu0 0.0
    %576 = vmatpush.msra.mxu0 0.0
    %577 = vmatpush.msra.mxu0 0.0
    %578 = vmatpush.msra.mxu0 0.0
    %579 = vmatpush.msra.mxu0 0.0
    %580 = vmatpush.msra.mxu0 0.0
    %581 = vmatpush.msra.mxu0 0.0
    %582 = vmatpush.msra.mxu0 0.0
    %583 = vmatpush.msra.mxu0 0.0
    %584 = vmatpush.msra.mxu0 0.0
    %585 = vmatpush.msra.mxu0 %v565
    %586 = vmatpush.msra.mxu0 %v564
    %587 = vmatpush.msra.mxu0 %v563
    %588 = vmatpush.msra.mxu0 %v562
    %589 = vmatmul.f32.gmra.mxu0 %v568
    %v590 = vpop.f32.mrf.mxu0
    %v591 = vadd.f32 %v566, %v590
    %592 = vmatmul.f32.gmra.mxu0 %v571
    %v593 = vpop.f32.mrf.mxu0
    %v594 = vadd.f32 %v566, %v593
    %595 = vdwg.mxu0
    %v596 = vld [vmem:[%s1 + $0x6b] ss:$0 sm:$0xff]
    %601 = vrot.lane.b32.xlu0 %v562, 96
    %v602 = vpop.permute.xlu0 %601
    %603 = vrot.lane.b32.xlu0 %v563, 96
    %v604 = vpop.permute.xlu0 %603
    %605 = vrot.lane.b32.xlu0 %v564, 96
    %v606 = vpop.permute.xlu0 %605
    %607 = vrot.lane.b32.xlu0 %v565, 96
    %v608 = vpop.permute.xlu0 %607
    %v614 = vsel %vm40, %v14, 0
    %v617 = vsel %vm40, %v15, 0
    %619 = vmatpush.msra.mxu0 0.0
    %620 = vmatpush.msra.mxu0 0.0
    %621 = vmatpush.msra.mxu0 0.0
    %622 = vmatpush.msra.mxu0 0.0
    %623 = vmatpush.msra.mxu0 0.0
    %624 = vmatpush.msra.mxu0 0.0
    %625 = vmatpush.msra.mxu0 0.0
    %626 = vmatpush.msra.mxu0 0.0
    %627 = vmatpush.msra.mxu0 0.0
    %628 = vmatpush.msra.mxu0 0.0
    %629 = vmatpush.msra.mxu0 0.0
    %630 = vmatpush.msra.mxu0 0.0
    %631 = vmatpush.msra.mxu0 %v608
    %632 = vmatpush.msra.mxu0 %v606
    %633 = vmatpush.msra.mxu0 %v604
    %634 = vmatpush.msra.mxu0 %v602
    %635 = vmatmul.f32.gmra.mxu0 %v614
    %v636 = vpop.f32.mrf.mxu0
    %v637 = vadd.f32 %v596, %v636
    %638 = vmatmul.f32.gmra.mxu0 %v617
    %v639 = vpop.f32.mrf.mxu0
    %v640 = vadd.f32 %v596, %v639
    %641 = vdwg.mxu0
    %v642 = vmul.f32 %v637, %v20
    %v643 = vmul.f32 %v637, %v21
    %v644 = vmul.f32 %v637, %v22
    %v645 = vmul.f32 %v637, %v23
    %v646 = vmul.f32 %v637, %v137
    %v647 = vmul.f32 %v637, %v139
    %v648 = vmul.f32 %v637, %v141
    %v649 = vmul.f32 %v637, %v143
    %v651 = vsel %vm40, %v591, 0
    %v654 = vsel %vm40, %v642, 0
    %v657 = vsel %vm40, %v643, 0
    %v660 = vsel %vm40, %v644, 0
    %v663 = vsel %vm40, %v645, 0
    %665 = vmatpush.xpose.msra.mxu0 0.0
    %666 = vmatpush.xpose.msra.mxu0 0.0
    %667 = vmatpush.xpose.msra.mxu0 0.0
    %668 = vmatpush.xpose.msra.mxu0 0.0
    %669 = vmatpush.xpose.msra.mxu0 0.0
    %670 = vmatpush.xpose.msra.mxu0 0.0
    %671 = vmatpush.xpose.msra.mxu0 0.0
    %672 = vmatpush.xpose.msra.mxu0 0.0
    %673 = vmatpush.xpose.msra.mxu0 0.0
    %674 = vmatpush.xpose.msra.mxu0 0.0
    %675 = vmatpush.xpose.msra.mxu0 0.0
    %676 = vmatpush.xpose.msra.mxu0 0.0
    %677 = vmatpush.xpose.msra.mxu0 %v663
    %678 = vmatpush.xpose.msra.mxu0 %v660
    %679 = vmatpush.xpose.msra.mxu0 %v657
    %680 = vmatpush.xpose.msra.mxu0 %v654
    %681 = vmatmul.f32.gmra.mxu0 %v651
    %v682 = vpop.f32.mrf.mxu0
    %v683 = vadd.f32 %v18, %v682
    %684 = vdwg.mxu0
    %v685 = vmul.f32 %v683, 1.442695
    %v686 = vpow.pop %v685
    %691 = vrot.lane.b32.xlu0 %v646, 96
    %v692 = vpop.permute.xlu0 %691
    %693 = vrot.lane.b32.xlu0 %v647, 96
    %v694 = vpop.permute.xlu0 %693
    %695 = vrot.lane.b32.xlu0 %v648, 96
    %v696 = vpop.permute.xlu0 %695
    %697 = vrot.lane.b32.xlu0 %v649, 96
    %v698 = vpop.permute.xlu0 %697
    %v704 = vsel %vm40, %v686, 0
    %706 = vmatpush.msra.mxu0 0.0
    %707 = vmatpush.msra.mxu0 0.0
    %708 = vmatpush.msra.mxu0 0.0
    %709 = vmatpush.msra.mxu0 0.0
    %710 = vmatpush.msra.mxu0 0.0
    %711 = vmatpush.msra.mxu0 0.0
    %712 = vmatpush.msra.mxu0 0.0
    %713 = vmatpush.msra.mxu0 0.0
    %714 = vmatpush.msra.mxu0 0.0
    %715 = vmatpush.msra.mxu0 0.0
    %716 = vmatpush.msra.mxu0 0.0
    %717 = vmatpush.msra.mxu0 0.0
    %718 = vmatpush.msra.mxu0 %v698
    %719 = vmatpush.msra.mxu0 %v696
    %720 = vmatpush.msra.mxu0 %v694
    %721 = vmatpush.msra.mxu0 %v692
    %722 = vmatmul.f32.gmra.mxu0 %v704
    %v723 = vpop.f32.mrf.mxu0
    %v724 = vadd.f32 0.0, %v723
    %725 = vdwg.mxu0
    %726 = vmatpush.msra.mxu0 0.0
    %727 = vmatpush.msra.mxu0 0.0
    %728 = vmatpush.msra.mxu0 0.0
    %729 = vmatpush.msra.mxu0 0.0
    %730 = vmatpush.msra.mxu0 0.0
    %731 = vmatpush.msra.mxu0 0.0
    %732 = vmatpush.msra.mxu0 0.0
    %733 = vmatpush.msra.mxu0 0.0
    %734 = vmatpush.msra.mxu0 0.0
    %735 = vmatpush.msra.mxu0 0.0
    %736 = vmatpush.msra.mxu0 0.0
    %737 = vmatpush.msra.mxu0 0.0
    %738 = vmatpush.msra.mxu0 %v23
    %739 = vmatpush.msra.mxu0 %v22
    %740 = vmatpush.msra.mxu0 %v21
    %741 = vmatpush.msra.mxu0 %v20
    %742 = vmatmul.f32.gmra.mxu0 %v704
    %v743 = vpop.f32.mrf.mxu0
    %v744 = vadd.f32 0.0, %v743
    %745 = vdwg.mxu0
    %v746 = vrcp.pop %v744
    %v747 = vmul.f32 %v744, %v746
    %v748 = vsub.f32 1.0, %v747
    %v749 = vmul.f32 %v746, %v748
    %v750 = vadd.f32 %v746, %v749
    %vm751 = vweird.f32 %v744
    %vm752 = vweird.f32 %v746
    %vm753 = vmor %vm751, %vm752
    %v754 = vsel %vm753, %v746, %v750
    %v755 = vand.u32 2147483647, %v744
    %vm756 = vcmp.eq.f32.partialorder %v755, 8.507059e+37
    %v757 = vand.u32 %v744, 2147483648
    %v758 = vor.u32 1.1754944e-38, %v757
    %v759 = vsel %vm756, %v758, %v754
    %v760 = vmul.f32 %v724, %v759
    %v761 = vmul.f32 %v640, %v20
    %v762 = vmul.f32 %v640, %v21
    %v763 = vmul.f32 %v640, %v22
    %v764 = vmul.f32 %v640, %v23
    %v765 = vmul.f32 %v640, %v137
    %v766 = vmul.f32 %v640, %v139
    %v767 = vmul.f32 %v640, %v141
    %v768 = vmul.f32 %v640, %v143
    %v770 = vsel %vm40, %v594, 0
    %v773 = vsel %vm40, %v761, 0
    %v776 = vsel %vm40, %v762, 0
    %v779 = vsel %vm40, %v763, 0
    %v782 = vsel %vm40, %v764, 0
    %784 = vmatpush.xpose.msra.mxu0 0.0
    %785 = vmatpush.xpose.msra.mxu0 0.0
    %786 = vmatpush.xpose.msra.mxu0 0.0
    %787 = vmatpush.xpose.msra.mxu0 0.0
    %788 = vmatpush.xpose.msra.mxu0 0.0
    %789 = vmatpush.xpose.msra.mxu0 0.0
    %790 = vmatpush.xpose.msra.mxu0 0.0
    %791 = vmatpush.xpose.msra.mxu0 0.0
    %792 = vmatpush.xpose.msra.mxu0 0.0
    %793 = vmatpush.xpose.msra.mxu0 0.0
    %794 = vmatpush.xpose.msra.mxu0 0.0
    %795 = vmatpush.xpose.msra.mxu0 0.0
    %796 = vmatpush.xpose.msra.mxu0 %v782
    %797 = vmatpush.xpose.msra.mxu0 %v779
    %798 = vmatpush.xpose.msra.mxu0 %v776
    %799 = vmatpush.xpose.msra.mxu0 %v773
    %800 = vmatmul.f32.gmra.mxu0 %v770
    %v801 = vpop.f32.mrf.mxu0
    %v802 = vadd.f32 %v19, %v801
    %803 = vdwg.mxu0
    %v804 = vmul.f32 %v802, 1.442695
    %v805 = vpow.pop %v804
    %810 = vrot.lane.b32.xlu0 %v765, 96
    %v811 = vpop.permute.xlu0 %810
    %812 = vrot.lane.b32.xlu0 %v766, 96
    %v813 = vpop.permute.xlu0 %812
    %814 = vrot.lane.b32.xlu0 %v767, 96
    %v815 = vpop.permute.xlu0 %814
    %816 = vrot.lane.b32.xlu0 %v768, 96
    %v817 = vpop.permute.xlu0 %816
    %v823 = vsel %vm40, %v805, 0
    %825 = vmatpush.msra.mxu0 0.0
    %826 = vmatpush.msra.mxu0 0.0
    %827 = vmatpush.msra.mxu0 0.0
    %828 = vmatpush.msra.mxu0 0.0
    %829 = vmatpush.msra.mxu0 0.0
    %830 = vmatpush.msra.mxu0 0.0
    %831 = vmatpush.msra.mxu0 0.0
    %832 = vmatpush.msra.mxu0 0.0
    %833 = vmatpush.msra.mxu0 0.0
    %834 = vmatpush.msra.mxu0 0.0
    %835 = vmatpush.msra.mxu0 0.0
    %836 = vmatpush.msra.mxu0 0.0
    %837 = vmatpush.msra.mxu0 %v817
    %838 = vmatpush.msra.mxu0 %v815
    %839 = vmatpush.msra.mxu0 %v813
    %840 = vmatpush.msra.mxu0 %v811
    %841 = vmatmul.f32.gmra.mxu0 %v823
    %v842 = vpop.f32.mrf.mxu0
    %v843 = vadd.f32 0.0, %v842
    %844 = vdwg.mxu0
    %845 = vmatpush.msra.mxu0 0.0
    %846 = vmatpush.msra.mxu0 0.0
    %847 = vmatpush.msra.mxu0 0.0
    %848 = vmatpush.msra.mxu0 0.0
    %849 = vmatpush.msra.mxu0 0.0
    %850 = vmatpush.msra.mxu0 0.0
    %851 = vmatpush.msra.mxu0 0.0
    %852 = vmatpush.msra.mxu0 0.0
    %853 = vmatpush.msra.mxu0 0.0
    %854 = vmatpush.msra.mxu0 0.0
    %855 = vmatpush.msra.mxu0 0.0
    %856 = vmatpush.msra.mxu0 0.0
    %857 = vmatpush.msra.mxu0 %v23
    %858 = vmatpush.msra.mxu0 %v22
    %859 = vmatpush.msra.mxu0 %v21
    %860 = vmatpush.msra.mxu0 %v20
    %861 = vmatmul.f32.gmra.mxu0 %v823
    %v862 = vpop.f32.mrf.mxu0
    %v863 = vadd.f32 0.0, %v862
    %864 = vdwg.mxu0
    %v865 = vrcp.pop %v863
    %v866 = vmul.f32 %v863, %v865
    %v867 = vsub.f32 1.0, %v866
    %v868 = vmul.f32 %v865, %v867
    %v869 = vadd.f32 %v865, %v868
    %vm870 = vweird.f32 %v863
    %vm871 = vweird.f32 %v865
    %vm872 = vmor %vm870, %vm871
    %v873 = vsel %vm872, %v865, %v869
    %v874 = vand.u32 2147483647, %v863
    %vm875 = vcmp.eq.f32.partialorder %v874, 8.507059e+37
    %v876 = vand.u32 %v863, 2147483648
    %v877 = vor.u32 1.1754944e-38, %v876
    %v878 = vsel %vm875, %v877, %v873
    %v879 = vmul.f32 %v843, %v878
    %v880 = vld [vmem:[%s1 + $0x6c] ss:$0 sm:$0xff]
    %881 = vrot.lane.b32.xlu0 %v562, 32
    %v882 = vpop.permute.xlu0 %881
    %883 = vrot.lane.b32.xlu0 %v563, 32
    %v884 = vpop.permute.xlu0 %883
    %885 = vrot.lane.b32.xlu0 %v564, 32
    %v886 = vpop.permute.xlu0 %885
    %887 = vrot.lane.b32.xlu0 %v565, 32
    %v888 = vpop.permute.xlu0 %887
    %v894 = vsel %vm40, %v760, 0
    %v897 = vsel %vm40, %v879, 0
    %899 = vmatpush.msra.mxu0 0.0
    %900 = vmatpush.msra.mxu0 0.0
    %901 = vmatpush.msra.mxu0 0.0
    %902 = vmatpush.msra.mxu0 0.0
    %903 = vmatpush.msra.mxu0 0.0
    %904 = vmatpush.msra.mxu0 0.0
    %905 = vmatpush.msra.mxu0 0.0
    %906 = vmatpush.msra.mxu0 0.0
    %907 = vmatpush.msra.mxu0 0.0
    %908 = vmatpush.msra.mxu0 0.0
    %909 = vmatpush.msra.mxu0 0.0
    %910 = vmatpush.msra.mxu0 0.0
    %911 = vmatpush.msra.mxu0 %v888
    %912 = vmatpush.msra.mxu0 %v886
    %913 = vmatpush.msra.mxu0 %v884
    %914 = vmatpush.msra.mxu0 %v882
    %915 = vmatmul.f32.gmra.mxu0 %v894
    %v916 = vpop.f32.mrf.mxu0
    %v917 = vadd.f32 %v880, %v916
    %918 = vmatmul.f32.gmra.mxu0 %v897
    %v919 = vpop.f32.mrf.mxu0
    %v920 = vadd.f32 %v880, %v919
    %921 = vdwg.mxu0
    %v922 = vsel %vm40, %v917, 0.0
    %923 = vadd.xlane.f32.xlu0 %v922
    %v924 = vpop.xlane.xlu0 %923
    %v925 = vsel %vm40, %v920, 0.0
    %926 = vadd.xlane.f32.xlu0 %v925
    %v927 = vpop.xlane.xlu0 %926
    %v928 = vmul.f32 %v924, %v53
    %v929 = vmul.f32 %v927, %v53
    %v930 = vsub.f32 %v917, %v928
    %v931 = vsub.f32 %v920, %v929
    %v932 = vmul.f32 %v930, %v930
    %v933 = vmul.f32 %v931, %v931
    %v934 = vsel %vm40, %v932, 0.0
    %935 = vadd.xlane.f32.xlu0 %v934
    %v936 = vpop.xlane.xlu0 %935
    %v937 = vsel %vm40, %v933, 0.0
    %938 = vadd.xlane.f32.xlu0 %v937
    %v939 = vpop.xlane.xlu0 %938
    %v940 = vmul.f32 %v936, %v53
    %v941 = vmul.f32 %v939, %v53
    %v942 = vadd.f32 %v940, 1e-05
    %v943 = vadd.f32 %v941, 1e-05
    %v944 = vrsqrt.pop %v942
    %v945 = vmul.f32 %v944, %v942
    %v946 = vmul.f32 %v945, %v944
    %v947 = vmul.f32 0.5, %v946
    %v948 = vsub.f32 1.5, %v947
    %v949 = vmul.f32 %v944, %v948
    %vm950 = vweird.f32 %v942
    %vm951 = vweird.f32 %v944
    %vm952 = vmor %vm950, %vm951
    %v953 = vsel %vm952, %v944, %v949
    %v954 = vrsqrt.pop %v943
    %v955 = vmul.f32 %v954, %v943
    %v956 = vmul.f32 %v955, %v954
    %v957 = vmul.f32 0.5, %v956
    %v958 = vsub.f32 1.5, %v957
    %v959 = vmul.f32 %v954, %v958
    %vm960 = vweird.f32 %v943
    %vm961 = vweird.f32 %v954
    %vm962 = vmor %vm960, %vm961
    %v963 = vsel %vm962, %v954, %v959
    %v964 = vmul.f32 %v930, %v953
    %v965 = vmul.f32 %v931, %v963
    %v966 = vld [vmem:[%s1 + $0x85] ss:$0 sm:$0xff]
    %v967 = vmul.f32 %v964, %v966
    %v968 = vmul.f32 %v965, %v966
    %v969 = vld [vmem:[%s1 + $0x86] ss:$0 sm:$0xff]
    %v970 = vadd.f32 %v967, %v969
    %v971 = vadd.f32 %v968, %v969
    %v972 = vadd.f32 %v510, %v970
    %v973 = vadd.f32 %v511, %v971
    %v974 = vsel %vm40, %v972, 0.0
    %975 = vadd.xlane.f32.xlu0 %v974
    %v976 = vpop.xlane.xlu0 %975
    %v977 = vsel %vm40, %v973, 0.0
    %978 = vadd.xlane.f32.xlu0 %v977
    %v979 = vpop.xlane.xlu0 %978
    %v980 = vmul.f32 %v976, %v53
    %v981 = vmul.f32 %v979, %v53
    %v982 = vsub.f32 %v972, %v980
    %v983 = vsub.f32 %v973, %v981
    %v984 = vmul.f32 %v982, %v982
    %v985 = vmul.f32 %v983, %v983
    %v986 = vsel %vm40, %v984, 0.0
    %987 = vadd.xlane.f32.xlu0 %v986
    %v988 = vpop.xlane.xlu0 %987
    %v989 = vsel %vm40, %v985, 0.0
    %990 = vadd.xlane.f32.xlu0 %v989
    %v991 = vpop.xlane.xlu0 %990
    %v992 = vmul.f32 %v988, %v53
    %v993 = vmul.f32 %v991, %v53
    %v994 = vadd.f32 %v992, 1e-05
    %v995 = vadd.f32 %v993, 1e-05
    %v996 = vrsqrt.pop %v994
    %v997 = vmul.f32 %v996, %v994
    %v998 = vmul.f32 %v997, %v996
    %v999 = vmul.f32 0.5, %v998
    %v1000 = vsub.f32 1.5, %v999
    %v1001 = vmul.f32 %v996, %v1000
    %vm1002 = vweird.f32 %v994
    %vm1003 = vweird.f32 %v996
    %vm1004 = vmor %vm1002, %vm1003
    %v1005 = vsel %vm1004, %v996, %v1001
    %v1006 = vrsqrt.pop %v995
    %v1007 = vmul.f32 %v1006, %v995
    %v1008 = vmul.f32 %v1007, %v1006
    %v1009 = vmul.f32 0.5, %v1008
    %v1010 = vsub.f32 1.5, %v1009
    %v1011 = vmul.f32 %v1006, %v1010
    %vm1012 = vweird.f32 %v995
    %vm1013 = vweird.f32 %v1006
    %vm1014 = vmor %vm1012, %vm1013
    %v1015 = vsel %vm1014, %v1006, %v1011
    %v1016 = vmul.f32 %v982, %v1005
    %v1017 = vmul.f32 %v983, %v1015
    %v1018 = vld [vmem:[%s1 + $0x87] ss:$0 sm:$0xff]
    %v1019 = vmul.f32 %v1016, %v1018
    %v1020 = vmul.f32 %v1017, %v1018
    %v1021 = vld [vmem:[%s1 + $0x98] ss:$0 sm:$0xff]
    %v1022 = vadd.f32 %v1019, %v1021
    %v1023 = vadd.f32 %v1020, %v1021
    %v1024 = vld [vmem:[%s1 + $0x10] sm:$0xff]
    %v1025 = vld [vmem:[%s1 + $0x28] sm:$0xff]
    %v1026 = vld [vmem:[%s1 + $0x40] sm:$0xff]
    %v1027 = vld [vmem:[%s1 + $0x58] sm:$0xff]
    %v1028 = vld [vmem:[%s1 + $0x6d] ss:$0 sm:$0xff]
    %v1030 = vsel %vm40, %v1022, 0
    %v1033 = vsel %vm40, %v1023, 0
    %1035 = vmatpush.msra.mxu0 0.0
    %1036 = vmatpush.msra.mxu0 0.0
    %1037 = vmatpush.msra.mxu0 0.0
    %1038 = vmatpush.msra.mxu0 0.0
    %1039 = vmatpush.msra.mxu0 0.0
    %1040 = vmatpush.msra.mxu0 0.0
    %1041 = vmatpush.msra.mxu0 0.0
    %1042 = vmatpush.msra.mxu0 0.0
    %1043 = vmatpush.msra.mxu0 0.0
    %1044 = vmatpush.msra.mxu0 0.0
    %1045 = vmatpush.msra.mxu0 0.0
    %1046 = vmatpush.msra.mxu0 0.0
    %1047 = vmatpush.msra.mxu0 %v1027
    %1048 = vmatpush.msra.mxu0 %v1026
    %1049 = vmatpush.msra.mxu0 %v1025
    %1050 = vmatpush.msra.mxu0 %v1024
    %1051 = vmatmul.f32.gmra.mxu0 %v1030
    %v1052 = vpop.f32.mrf.mxu0
    %v1053 = vadd.f32 %v1028, %v1052
    %1054 = vmatmul.f32.gmra.mxu0 %v1033
    %v1055 = vpop.f32.mrf.mxu0
    %v1056 = vadd.f32 %v1028, %v1055
    %1057 = vdwg.mxu0
    %v1058 = vmul.f32 %v1053, %v1053
    %v1059 = vmul.f32 %v1056, %v1056
    %v1060 = vmul.f32 %v1053, %v1058
    %v1061 = vmul.f32 %v1056, %v1059
    %v1062 = vmul.f32 %v1060, 0.044715
    %v1063 = vmul.f32 %v1061, 0.044715
    %v1064 = vadd.f32 %v1053, %v1062
    %v1065 = vadd.f32 %v1056, %v1063
    %v1066 = vmul.f32 %v1064, 0.7978846
    %v1067 = vmul.f32 %v1065, 0.7978846
    %v1068 = vtanh.pop %v1066
    %v1069 = vtanh.pop %v1067
    %v1070 = vadd.f32 %v1068, 1.0
    %v1071 = vadd.f32 %v1069, 1.0
    %v1072 = vmul.f32 %v1070, 0.5
    %v1073 = vmul.f32 %v1071, 0.5
    %v1074 = vmul.f32 %v1053, %v1072
    %v1075 = vmul.f32 %v1056, %v1073
    %1076 = vadd.xlane.f32.xlu0 %v1074
    %v1077 = vpop.xlane.xlu0 %1076
    %1078 = vadd.xlane.f32.xlu0 %v1075
    %v1079 = vpop.xlane.xlu0 %1078
    %v1080 = vrcp.pop 128.0
    %v1081 = vmul.f32 128.0, %v1080
    %v1082 = vsub.f32 1.0, %v1081
    %v1083 = vmul.f32 %v1080, %v1082
    %v1084 = vadd.f32 %v1080, %v1083
    %vm1085 = vweird.f32 %v1080
    %v1086 = vsel %vm1085, %v1080, %v1084
    %v1087 = vmul.f32 %v1077, %v1086
    %v1088 = vmul.f32 %v1079, %v1086
    %v1089 = vsub.f32 %v1074, %v1087
    %v1090 = vsub.f32 %v1075, %v1088
    %v1091 = vmul.f32 %v1089, %v1089
    %v1092 = vmul.f32 %v1090, %v1090
    %1093 = vadd.xlane.f32.xlu0 %v1091
    %v1094 = vpop.xlane.xlu0 %1093
    %1095 = vadd.xlane.f32.xlu0 %v1092
    %v1096 = vpop.xlane.xlu0 %1095
    %v1097 = vmul.f32 %v1094, %v1086
    %v1098 = vmul.f32 %v1096, %v1086
    %v1099 = vadd.f32 %v1097, 1e-05
    %v1100 = vadd.f32 %v1098, 1e-05
    %v1101 = vrsqrt.pop %v1099
    %v1102 = vmul.f32 %v1101, %v1099
    %v1103 = vmul.f32 %v1102, %v1101
    %v1104 = vmul.f32 0.5, %v1103
    %v1105 = vsub.f32 1.5, %v1104
    %v1106 = vmul.f32 %v1101, %v1105
    %vm1107 = vweird.f32 %v1099
    %vm1108 = vweird.f32 %v1101
    %vm1109 = vmor %vm1107, %vm1108
    %v1110 = vsel %vm1109, %v1101, %v1106
    %v1111 = vrsqrt.pop %v1100
    %v1112 = vmul.f32 %v1111, %v1100
    %v1113 = vmul.f32 %v1112, %v1111
    %v1114 = vmul.f32 0.5, %v1113
    %v1115 = vsub.f32 1.5, %v1114
    %v1116 = vmul.f32 %v1111, %v1115
    %vm1117 = vweird.f32 %v1100
    %vm1118 = vweird.f32 %v1111
    %vm1119 = vmor %vm1117, %vm1118
    %v1120 = vsel %vm1119, %v1111, %v1116
    %v1121 = vmul.f32 %v1089, %v1110
    %v1122 = vmul.f32 %v1090, %v1120
    %v1123 = vld [vmem:[%s1 + $0x99] ss:$0 sm:$0xff]
    %v1124 = vmul.f32 %v1121, %v1123
    %v1125 = vmul.f32 %v1122, %v1123
    %v1126 = vld [vmem:[%s1 + $0x9a] ss:$0 sm:$0xff]
    %v1127 = vadd.f32 %v1124, %v1126
    %v1128 = vadd.f32 %v1125, %v1126
    %v1129 = vld [vmem:[%s1 + $0x6e] ss:$0 sm:$0xff]
    %1130 = vmatpush.msra.mxu0 %v39
    %1131 = vmatpush.msra.mxu0 %v38
    %1132 = vmatpush.msra.mxu0 %v37
    %1133 = vmatpush.msra.mxu0 %v36
    %1134 = vmatpush.msra.mxu0 %v35
    %1135 = vmatpush.msra.mxu0 %v34
    %1136 = vmatpush.msra.mxu0 %v33
    %1137 = vmatpush.msra.mxu0 %v32
    %1138 = vmatpush.msra.mxu0 %v31
    %1139 = vmatpush.msra.mxu0 %v30
    %1140 = vmatpush.msra.mxu0 %v29
    %1141 = vmatpush.msra.mxu0 %v28
    %1142 = vmatpush.msra.mxu0 %v27
    %1143 = vmatpush.msra.mxu0 %v26
    %1144 = vmatpush.msra.mxu0 %v25
    %1145 = vmatpush.msra.mxu0 %v24
    %1146 = vmatmul.f32.gmra.mxu0 %v1127
    %v1147 = vpop.f32.mrf.mxu0
    %v1148 = vadd.f32 %v1129, %v1147
    %1149 = vmatmul.f32.gmra.mxu0 %v1128
    %v1150 = vpop.f32.mrf.mxu0
    %v1151 = vadd.f32 %v1129, %v1150
    %1152 = vdwg.mxu0
    %v1153 = vadd.f32 %v972, %v1148
    %v1154 = vadd.f32 %v973, %v1151
    %1155 = vst.msk [vmem:[#allocation2] sm:$0xff] %vm40, %v1153
    %1156 = vst.msk [vmem:[#allocation2 + $0x8] sm:$0xff] %vm40, %v1154
    // Predicated region
    $region10: #{ofa_decoder_layer.1} parent=1 // pred_check
      _
    $region11: #{ofa_decoder_layer.1} parent=1 // pred_check_branch
      %1158 = sbr.rel (0) target = $region13
    $region12: #{ofa_decoder_layer.1} parent=1 // pred_region
      %1160 = vsyncadd [#allocation3], 0
      %s1161 = sshll.u32 [#allocation2], 4
      %s1162 = int_to_ptr.vmem [resolvable:$true] %s1161
      %s1163 = sshll.u32 %s2, 4
      %s1164 = int_to_ptr.hbm [resolvable:$true] %s1163
      %1169 = dma.vmem_to_hbm [thread:$0]  %s1162, 256, %s1164, [#allocation3], 128, 128, 8
    $region13: #{ofa_decoder_layer.1} parent=1 // pred_fallthru
      _
    // Predicated region
    $region14: #{ofa_decoder_layer.1} parent=1 // pred_check
      _
    $region15: #{ofa_decoder_layer.1} parent=1 // pred_check_branch
      %1171 = sbr.rel (0) target = $region17
    $region16: #{ofa_decoder_layer.1} parent=1 // pred_region
      %1173 = dma.done [#allocation3], 256
    $region17: #{ofa_decoder_layer.1} parent=1 // pred_fallthru
      _
    %1174 = vsyncpa [#allocation3], 1

</llo_original>
